<compile_context>
chip_gen: v6e
topology: v6e:2x2x1
jax: 0.10.0
libtpu: 0.0.40
codegen_flags: <defaults>
</compile_context>

<pallas_src>
import jax
import jax.numpy as jnp
from jax.experimental import pallas as pl
from jax.experimental.pallas import tpu as pltpu


_H1, _H2 = 256, 128          # hidden widths fixed by the module
_TK_MAX = 2048               # fc1 K-tile (only engaged when d_in > _TK_MAX)
_TM_CAP = 512                # batch-tile cap (amortizes ~0.35us per grid step)


def _round_up(x, m):
    return ((x + m - 1) // m) * m


def _vmem_limit_bytes():
    # 3/4 of physical VMEM leaves headroom for double-buffering + compiler
    # temporaries (v5e/v6e: 96 MiB, v7x: 48 MiB).
    try:
        cap = pltpu.get_tpu_info().vmem_capacity_bytes
    except Exception:
        cap = 64 << 20
    return int(cap * 3 // 4)


def _mlp_kernel(x_ref, w1_ref, b1_ref, w2_ref, b2_ref, w3_ref, b3_ref,
                o_ref, acc_ref):
    """Fused flatten->fc1+ReLU->fc2+ReLU->fc3 for one (TM, TK) x tile.

    grid = (m, k): m tiles the batch, k tiles d_in for fc1.  acc_ref carries
    the f32 fc1 accumulator across k; fc2/fc3 run once per m tile at k==last.
    """
    k = pl.program_id(1)

    @pl.when(k == 0)
    def _init():
        acc_ref[...] = jnp.zeros_like(acc_ref)

    # fc1 partial product: x streamed as f32, cast to bf16 at the MXU input
    # (avoids a separate HBM cast pass over x in the wrapper).
    acc_ref[...] += jnp.dot(x_ref[...].astype(jnp.bfloat16), w1_ref[...],
                            preferred_element_type=jnp.float32)

    @pl.when(k == pl.num_programs(1) - 1)
    def _finalize():
        h1 = jnp.maximum(acc_ref[...] + b1_ref[...], 0.0)          # f32 ReLU
        h2 = jnp.dot(h1.astype(w2_ref.dtype), w2_ref[...],
                     preferred_element_type=jnp.float32)
        h2 = jnp.maximum(h2 + b2_ref[...], 0.0)
        h3 = jnp.dot(h2.astype(w3_ref.dtype), w3_ref[...],
                     preferred_element_type=jnp.float32)
        o_ref[...] = (h3 + b3_ref[...]).astype(o_ref.dtype)


def init_params(key, in_features, out_features):
    """nn.Linear-style uniform(-1/sqrt(fan_in), +bound) init; weights stored
    pre-transposed as (K, N) and biases as (1, N) rows."""
    def linear(k, fan_in, fan_out):
        kw, kb = jax.random.split(k)
        bound = 1.0 / jnp.sqrt(jnp.float32(fan_in))
        w = jax.random.uniform(kw, (fan_in, fan_out), jnp.float32, -bound, bound)
        b = jax.random.uniform(kb, (1, fan_out), jnp.float32, -bound, bound)
        return w, b

    k1, k2, k3 = jax.random.split(key, 3)
    w1, b1 = linear(k1, in_features, _H1)
    w2, b2 = linear(k2, _H1, _H2)
    w3, b3 = linear(k3, _H2, out_features)
    return {"w1": w1, "b1": b1, "w2": w2, "b2": b2, "w3": w3, "b3": b3}


def prepare_params(params):
    """One-time kernel-layout prep (hoisted out of mlp_forward so repeated
    calls don't re-pad / re-cast the weights)."""
    w1, b1 = params["w1"], params["b1"]          # (d_in, 256), (1, 256)
    w2, b2 = params["w2"], params["b2"]          # (256, 128), (1, 128)
    w3, b3 = params["w3"], params["b3"]          # (128, d_out), (1, d_out)
    d_in, d_out = int(w1.shape[0]), int(w3.shape[1])

    # Lane-dense output columns: zero-pad d_out up to a multiple of 128.
    d_out_p = _round_up(d_out, 128)
    if d_out_p != d_out:
        w3 = jnp.pad(w3, ((0, 0), (0, d_out_p - d_out)))
        b3 = jnp.pad(b3, ((0, 0), (0, d_out_p - d_out)))

    # fc1 K-tiling: full-width when d_in fits, otherwise TK-chunked with w1's
    # rows zero-padded so the ragged last K block contributes exactly zero.
    if d_in <= _TK_MAX:
        tk, d_in_p = d_in, d_in
    else:
        tk = _TK_MAX
        d_in_p = _round_up(d_in, tk)
        w1 = jnp.pad(w1, ((0, d_in_p - d_in), (0, 0)))

    return {
        "w1": w1.astype(jnp.bfloat16), "b1": b1.astype(jnp.float32),
        "w2": w2.astype(jnp.bfloat16), "b2": b2.astype(jnp.float32),
        "w3": w3.astype(jnp.bfloat16), "b3": b3.astype(jnp.float32),
        "d_in": d_in, "d_in_p": d_in_p, "tk": tk,
        "d_out": d_out, "d_out_p": d_out_p,
    }


def _choose_tm(batch, tk, num_k, d_out_p, out_itemsize, vmem_budget):
    """Largest sublane-aligned batch tile fitting the VMEM budget (cap 512),
    with a 2-way split of tiny batches so both v7x TensorCores get work."""
    w1_bufs = 2 if num_k > 1 else 1                      # streamed vs resident
    fixed = (w1_bufs * tk * _H1 * 2                      # fc1 weight block(s), bf16
             + _H1 * _H2 * 2 + _H2 * d_out_p * 2         # w2, w3 (single-buffered)
             + 8 * (_H1 + _H2 + d_out_p) * 4)            # biases, sublane-padded f32
    per_row = (2 * tk * 4                                # x tile f32, double-buffered
               + 2 * d_out_p * out_itemsize              # out tile, double-buffered
               + _H1 * 4                                 # fc1 f32 accumulator scratch
               + (_H1 + _H2) * 4)                        # h1/h2 live f32 margin
    avail = int(vmem_budget * 0.8) - fixed
    if avail < 8 * per_row:
        raise ValueError(
            f"MLP Pallas kernel does not fit VMEM: fixed={fixed}B, "
            f"per_row={per_row}B, budget={vmem_budget}B")
    tm = min(_TM_CAP, (avail // per_row) // 8 * 8)

    b8 = _round_up(batch, 8)
    if b8 <= tm:
        # Whole batch fits one tile: split in two so the "parallel" batch axis
        # can land on both v7x TensorCores (extra grid step is ~free elsewhere).
        tm = _round_up(pl.cdiv(b8, 2), 8) if b8 > 8 else 8
    return tm


def mlp_forward(x_nchw, prepared, *, out_dtype=jnp.float32):
    """Forward pass of MLP on TPU via a fused Pallas kernel.

    x_nchw: (B, ...) float32, flattened like nn.Flatten.  `prepared` comes from
    prepare_params().  out_dtype=jnp.bfloat16 halves output writeback if the
    consumer tolerates it.
    """
    B = x_nchw.shape[0]
    x2d = x_nchw.reshape(B, -1)                 # nn.Flatten semantics; stays f32
    d_in = prepared["d_in"]
    assert x2d.shape[1] == d_in, (x2d.shape, d_in)

    d_in_p, tk = prepared["d_in_p"], prepared["tk"]
    d_out, d_out_p = prepared["d_out"], prepared["d_out_p"]
    num_k = d_in_p // tk
    if d_in_p != d_in:
        # Only needed when d_in > _TK_MAX and ragged: zero-pad x's feature dim
        # to match w1's zero-padded rows (keeps the last K block's sum exact).
        x2d = jnp.pad(x2d, ((0, 0), (0, d_in_p - d_in)))

    out_itemsize = jnp.dtype(out_dtype).itemsize
    vmem_limit = _vmem_limit_bytes()
    tm = _choose_tm(B, tk, num_k, d_out_p, out_itemsize, vmem_limit)

    b8 = _round_up(B, 8)
    grid = (pl.cdiv(b8, tm), num_k)

    w1p, b1p = prepared["w1"], prepared["b1"]
    w2p, b2p = prepared["w2"], prepared["b2"]
    w3p, b3p = prepared["w3"], prepared["b3"]

    flops = 2 * B * (d_in_p * _H1 + _H1 * _H2 + _H2 * d_out_p)
    bytes_accessed = (x2d.size * 4 + w1p.size * 2 + w2p.size * 2 + w3p.size * 2
                      + (b1p.size + b2p.size + b3p.size) * 4
                      + b8 * d_out_p * out_itemsize)

    def build_call(resident_mode):
        def resident(shape):
            return pl.BlockSpec(shape, lambda i, k: (0, 0),
                                pipeline_mode=resident_mode)
        # w1 is streamed over k when K-tiled, fully resident otherwise.
        w1_mode = resident_mode if num_k == 1 else None
        return pl.pallas_call(
            _mlp_kernel,
            out_shape=jax.ShapeDtypeStruct((b8, d_out_p), out_dtype),
            grid=grid,
            in_specs=[
                pl.BlockSpec((tm, tk), lambda i, k: (i, k)),     # x: streamed f32
                pl.BlockSpec((tk, _H1), lambda i, k: (k, 0),
                             pipeline_mode=w1_mode),             # w1
                resident((1, _H1)),                              # b1
                resident((_H1, _H2)),                            # w2
                resident((1, _H2)),                              # b2
                resident((_H2, d_out_p)),                        # w3
                resident((1, d_out_p)),                          # b3
            ],
            out_specs=pl.BlockSpec((tm, d_out_p), lambda i, k: (i, 0)),
            scratch_shapes=[pltpu.VMEM((tm, _H1), jnp.float32)],
            compiler_params=pltpu.CompilerParams(
                dimension_semantics=("parallel", "arbitrary"),
                vmem_limit_bytes=vmem_limit),
            cost_estimate=pl.CostEstimate(flops=flops, transcendentals=0,
                                          bytes_accessed=bytes_accessed),
        )

    args = (x2d, w1p, b1p, w2p, b2p, w3p, b3p)
    try:
        # Single-buffer grid-invariant weights/biases (halves their VMEM;
        # matters most on v7x's 64 MiB VMEM).
        out = build_call(pl.Buffered(1))(*args)
    except Exception:
        # Fallback: default double-buffering if buffer_count=1 is rejected.
        out = build_call(None)(*args)

    return out[:B, :d_out]


def mlp_reference(x_nchw, params):
    """Pure-JAX f32 reference matching the PyTorch forward."""
    x = x_nchw.reshape(x_nchw.shape[0], -1)
    h = jnp.maximum(x @ params["w1"] + params["b1"], 0.0)
    h = jnp.maximum(h @ params["w2"] + params["b2"], 0.0)
    return h @ params["w3"] + params["b3"]


if __name__ == "__main__":
    key = jax.random.PRNGKey(0)
    kx, kp = jax.random.split(key)

    # Small NCHW input: batch=2, channels=4, spatial=16x16 -> in_features=1024.
    B, C, H, W = 2, 4, 16, 16
    in_features = C * H * W
    out_features = 32

    x = jax.random.normal(kx, (B, C, H, W), dtype=jnp.float32)
    params = init_params(kp, in_features, out_features)
    prepared = prepare_params(params)

    out = mlp_forward(x, prepared)
    out = jax.block_until_ready(out)

    ref = mlp_reference(x, params)
    assert out.shape == (B, out_features), out.shape
    # bf16 MXU inputs with f32 accumulation -> loosened tolerance vs f32 ref.
    assert jnp.allclose(out, ref, atol=5e-2, rtol=5e-2), \
        f"max abs err {jnp.max(jnp.abs(out - ref))}"

    print("KERNEL_OK")
</pallas_src>

<mosaic_0001>
module attributes {stable_mosaic.version = 11 : i64} {
  func.func @_mlp_kernel(%arg0: i32, %arg1: i32, %arg2: memref<8x1024xf32, #tpu.memory_space<vmem>>, %arg3: memref<1024x256xbf16, #tpu.memory_space<vmem>>, %arg4: memref<1x256xf32, #tpu.memory_space<vmem>>, %arg5: memref<256x128xbf16, #tpu.memory_space<vmem>>, %arg6: memref<1x128xf32, #tpu.memory_space<vmem>>, %arg7: memref<128x128xbf16, #tpu.memory_space<vmem>>, %arg8: memref<1x128xf32, #tpu.memory_space<vmem>>, %arg9: memref<8x128xf32, #tpu.memory_space<vmem>>, %arg10: memref<8x256xf32, #tpu.memory_space<vmem>>) attributes {dimension_semantics = [#tpu.dimension_semantics<parallel>, #tpu.dimension_semantics<arbitrary>], iteration_bounds = array<i64: 1, 1>, scalar_prefetch = 0 : i64, scratch_operands = 1 : i64, tpu.core_type = #tpu.core_type<tc>, window_params = [{transform_indices = @transform_0, window_bounds = array<i64: 8, 1024>}, {pipeline_mode = #tpu.pipeline_mode<synchronous>, transform_indices = @transform_1, window_bounds = array<i64: 1024, 256>}, {pipeline_mode = #tpu.pipeline_mode<synchronous>, transform_indices = @transform_2, window_bounds = array<i64: 1, 256>}, {pipeline_mode = #tpu.pipeline_mode<synchronous>, transform_indices = @transform_3, window_bounds = array<i64: 256, 128>}, {pipeline_mode = #tpu.pipeline_mode<synchronous>, transform_indices = @transform_4, window_bounds = array<i64: 1, 128>}, {pipeline_mode = #tpu.pipeline_mode<synchronous>, transform_indices = @transform_5, window_bounds = array<i64: 128, 128>}, {pipeline_mode = #tpu.pipeline_mode<synchronous>, transform_indices = @transform_6, window_bounds = array<i64: 1, 128>}, {transform_indices = @transform_7, window_bounds = array<i64: 8, 128>}]} {
    %c0_i32 = arith.constant 0 : i32
    %0 = arith.cmpi eq, %arg1, %c0_i32 : i32
    %1 = arith.extui %0 : i1 to i32
    %c0_i32_0 = arith.constant 0 : i32
    %2 = arith.cmpi ne, %1, %c0_i32_0 : i32
    scf.if %2 {
      %cst_10 = arith.constant 0.000000e+00 : f32
      %13 = vector.broadcast %cst_10 : f32 to vector<8x256xf32>
      %c0_11 = arith.constant 0 : index
      %c0_12 = arith.constant 0 : index
      %14 = vector.load %arg10[%c0_11, %c0_12] : memref<8x256xf32, #tpu.memory_space<vmem>>, vector<8x256xf32>
      tpu.vector_store %arg10[%c0_11, %c0_12], %13 {strides = array<i32>} : memref<8x256xf32, #tpu.memory_space<vmem>>, vector<8x256xf32>,
    } else {
    }
    %c0 = arith.constant 0 : index
    %c0_1 = arith.constant 0 : index
    %3 = vector.load %arg10[%c0, %c0_1] : memref<8x256xf32, #tpu.memory_space<vmem>>, vector<8x256xf32>
    %c0_2 = arith.constant 0 : index
    %c0_3 = arith.constant 0 : index
    %4 = vector.load %arg2[%c0_2, %c0_3] : memref<8x1024xf32, #tpu.memory_space<vmem>>, vector<8x1024xf32>
    %5 = arith.truncf %4 : vector<8x1024xf32> to vector<8x1024xbf16>
    %c0_4 = arith.constant 0 : index
    %c0_5 = arith.constant 0 : index
    %6 = vector.load %arg3[%c0_4, %c0_5] : memref<1024x256xbf16, #tpu.memory_space<vmem>>, vector<1024x256xbf16>
    %cst = arith.constant dense<0.000000e+00> : vector<8x256xf32>
    %7 = tpu.matmul %5, %6, %cst {dimension_numbers = #tpu.dot_dimension_numbers<[1], [0], [0], [1], [0, 0, 1, 1], [], []>} : vector<8x1024xbf16>, vector<1024x256xbf16>, vector<8x256xf32> -> vector<8x256xf32>
    %8 = arith.addf %3, %7 : vector<8x256xf32>
    %c0_6 = arith.constant 0 : index
    %c0_7 = arith.constant 0 : index
    %9 = vector.load %arg10[%c0_6, %c0_7] : memref<8x256xf32, #tpu.memory_space<vmem>>, vector<8x256xf32>
    tpu.vector_store %arg10[%c0_6, %c0_7], %8 {strides = array<i32>} : memref<8x256xf32, #tpu.memory_space<vmem>>, vector<8x256xf32>,
    %c0_i32_8 = arith.constant 0 : i32
    %10 = arith.cmpi eq, %arg1, %c0_i32_8 : i32
    %11 = arith.extui %10 : i1 to i32
    %c0_i32_9 = arith.constant 0 : i32
    %12 = arith.cmpi ne, %11, %c0_i32_9 : i32
    scf.if %12 {
      %c0_10 = arith.constant 0 : index
      %c0_11 = arith.constant 0 : index
      %13 = vector.load %arg10[%c0_10, %c0_11] : memref<8x256xf32, #tpu.memory_space<vmem>>, vector<8x256xf32>
      %c0_12 = arith.constant 0 : index
      %c0_13 = arith.constant 0 : index
      %14 = vector.load %arg4[%c0_12, %c0_13] : memref<1x256xf32, #tpu.memory_space<vmem>>, vector<1x256xf32>
      %15 = vector.broadcast %14 : vector<1x256xf32> to vector<8x256xf32>
      %16 = arith.addf %13, %15 : vector<8x256xf32>
      %cst_14 = arith.constant 0.000000e+00 : f32
      %17 = vector.broadcast %cst_14 : f32 to vector<8x256xf32>
      %18 = arith.maximumf %16, %17 : vector<8x256xf32>
      %19 = arith.truncf %18 : vector<8x256xf32> to vector<8x256xbf16>
      %c0_15 = arith.constant 0 : index
      %c0_16 = arith.constant 0 : index
      %20 = vector.load %arg5[%c0_15, %c0_16] : memref<256x128xbf16, #tpu.memory_space<vmem>>, vector<256x128xbf16>
      %cst_17 = arith.constant dense<0.000000e+00> : vector<8x128xf32>
      %21 = tpu.matmul %19, %20, %cst_17 {dimension_numbers = #tpu.dot_dimension_numbers<[1], [0], [0], [1], [0, 0, 1, 1], [], []>} : vector<8x256xbf16>, vector<256x128xbf16>, vector<8x128xf32> -> vector<8x128xf32>
      %c0_18 = arith.constant 0 : index
      %c0_19 = arith.constant 0 : index
      %22 = vector.load %arg6[%c0_18, %c0_19] : memref<1x128xf32, #tpu.memory_space<vmem>>, vector<1x128xf32>
      %23 = vector.broadcast %22 : vector<1x128xf32> to vector<8x128xf32>
      %24 = arith.addf %21, %23 : vector<8x128xf32>
      %cst_20 = arith.constant 0.000000e+00 : f32
      %25 = vector.broadcast %cst_20 : f32 to vector<8x128xf32>
      %26 = arith.maximumf %24, %25 : vector<8x128xf32>
      %27 = arith.truncf %26 : vector<8x128xf32> to vector<8x128xbf16>
      %c0_21 = arith.constant 0 : index
      %c0_22 = arith.constant 0 : index
      %28 = vector.load %arg7[%c0_21, %c0_22] : memref<128x128xbf16, #tpu.memory_space<vmem>>, vector<128x128xbf16>
      %cst_23 = arith.constant dense<0.000000e+00> : vector<8x128xf32>
      %29 = tpu.matmul %27, %28, %cst_23 {dimension_numbers = #tpu.dot_dimension_numbers<[1], [0], [0], [1], [0, 0, 1, 1], [], []>} : vector<8x128xbf16>, vector<128x128xbf16>, vector<8x128xf32> -> vector<8x128xf32>
      %c0_24 = arith.constant 0 : index
      %c0_25 = arith.constant 0 : index
      %30 = vector.load %arg8[%c0_24, %c0_25] : memref<1x128xf32, #tpu.memory_space<vmem>>, vector<1x128xf32>
      %31 = vector.broadcast %30 : vector<1x128xf32> to vector<8x128xf32>
      %32 = arith.addf %29, %31 : vector<8x128xf32>
      %c0_26 = arith.constant 0 : index
      %c0_27 = arith.constant 0 : index
      %33 = vector.load %arg9[%c0_26, %c0_27] : memref<8x128xf32, #tpu.memory_space<vmem>>, vector<8x128xf32>
      tpu.vector_store %arg9[%c0_26, %c0_27], %32 {strides = array<i32>} : memref<8x128xf32, #tpu.memory_space<vmem>>, vector<8x128xf32>,
    } else {
    }
    return
  }
  func.func @transform_0(%arg0: i32, %arg1: i32) -> (i32, i32) {
    %c0_i32 = arith.constant 0 : i32
    return %arg0, %arg1 : i32, i32
  }
  func.func @transform_1(%arg0: i32, %arg1: i32) -> (i32, i32) {
    %c0_i32 = arith.constant 0 : i32
    %c0_i32_0 = arith.constant 0 : i32
    return %arg1, %c0_i32 : i32, i32
  }
  func.func @transform_2(%arg0: i32, %arg1: i32) -> (i32, i32) {
    %c0_i32 = arith.constant 0 : i32
    %c0_i32_0 = arith.constant 0 : i32
    %c0_i32_1 = arith.constant 0 : i32
    return %c0_i32, %c0_i32_0 : i32, i32
  }
  func.func @transform_3(%arg0: i32, %arg1: i32) -> (i32, i32) {
    %c0_i32 = arith.constant 0 : i32
    %c0_i32_0 = arith.constant 0 : i32
    %c0_i32_1 = arith.constant 0 : i32
    return %c0_i32, %c0_i32_0 : i32, i32
  }
  func.func @transform_4(%arg0: i32, %arg1: i32) -> (i32, i32) {
    %c0_i32 = arith.constant 0 : i32
    %c0_i32_0 = arith.constant 0 : i32
    %c0_i32_1 = arith.constant 0 : i32
    return %c0_i32, %c0_i32_0 : i32, i32
  }
  func.func @transform_5(%arg0: i32, %arg1: i32) -> (i32, i32) {
    %c0_i32 = arith.constant 0 : i32
    %c0_i32_0 = arith.constant 0 : i32
    %c0_i32_1 = arith.constant 0 : i32
    return %c0_i32, %c0_i32_0 : i32, i32
  }
  func.func @transform_6(%arg0: i32, %arg1: i32) -> (i32, i32) {
    %c0_i32 = arith.constant 0 : i32
    %c0_i32_0 = arith.constant 0 : i32
    %c0_i32_1 = arith.constant 0 : i32
    return %c0_i32, %c0_i32_0 : i32, i32
  }
  func.func @transform_7(%arg0: i32, %arg1: i32) -> (i32, i32) {
    %c0_i32 = arith.constant 0 : i32
    %c0_i32_0 = arith.constant 0 : i32
    return %arg0, %c0_i32 : i32, i32
  }
}

module attributes {stable_mosaic.version = 11 : i64} {
  func.func @_mlp_kernel(%arg0: i32, %arg1: i32, %arg2: memref<8x1024xf32, #tpu.memory_space<vmem>>, %arg3: memref<1024x256xbf16, #tpu.memory_space<vmem>>, %arg4: memref<1x256xf32, #tpu.memory_space<vmem>>, %arg5: memref<256x128xbf16, #tpu.memory_space<vmem>>, %arg6: memref<1x128xf32, #tpu.memory_space<vmem>>, %arg7: memref<128x128xbf16, #tpu.memory_space<vmem>>, %arg8: memref<1x128xf32, #tpu.memory_space<vmem>>, %arg9: memref<8x128xf32, #tpu.memory_space<vmem>>, %arg10: memref<8x256xf32, #tpu.memory_space<vmem>>) attributes {dimension_semantics = [#tpu.dimension_semantics<parallel>, #tpu.dimension_semantics<arbitrary>], iteration_bounds = array<i64: 1, 1>, scalar_prefetch = 0 : i64, scratch_operands = 1 : i64, tpu.core_type = #tpu.core_type<tc>, window_params = [{transform_indices = @transform_0, window_bounds = array<i64: 8, 1024>}, {transform_indices = @transform_1, window_bounds = array<i64: 1024, 256>}, {pipeline_mode = #tpu.pipeline_mode<synchronous>, transform_indices = @transform_2, window_bounds = array<i64: 1, 256>}, {pipeline_mode = #tpu.pipeline_mode<synchronous>, transform_indices = @transform_3, window_bounds = array<i64: 256, 128>}, {pipeline_mode = #tpu.pipeline_mode<synchronous>, transform_indices = @transform_4, window_bounds = array<i64: 1, 128>}, {pipeline_mode = #tpu.pipeline_mode<synchronous>, transform_indices = @transform_5, window_bounds = array<i64: 128, 128>}, {pipeline_mode = #tpu.pipeline_mode<synchronous>, transform_indices = @transform_6, window_bounds = array<i64: 1, 128>}, {transform_indices = @transform_7, window_bounds = array<i64: 8, 128>}]} {
    %c0_i32 = arith.constant 0 : i32
    %0 = arith.cmpi eq, %arg1, %c0_i32 : i32
    %1 = arith.extui %0 : i1 to i32
    %c0_i32_0 = arith.constant 0 : i32
    %2 = arith.cmpi ne, %1, %c0_i32_0 : i32
    scf.if %2 {
      %cst_10 = arith.constant 0.000000e+00 : f32
      %13 = vector.broadcast %cst_10 : f32 to vector<8x256xf32>
      %c0_11 = arith.constant 0 : index
      %c0_12 = arith.constant 0 : index
      %14 = vector.load %arg10[%c0_11, %c0_12] : memref<8x256xf32, #tpu.memory_space<vmem>>, vector<8x256xf32>
      tpu.vector_store %arg10[%c0_11, %c0_12], %13 {strides = array<i32>} : memref<8x256xf32, #tpu.memory_space<vmem>>, vector<8x256xf32>,
    } else {
    }
    %c0 = arith.constant 0 : index
    %c0_1 = arith.constant 0 : index
    %3 = vector.load %arg10[%c0, %c0_1] : memref<8x256xf32, #tpu.memory_space<vmem>>, vector<8x256xf32>
    %c0_2 = arith.constant 0 : index
    %c0_3 = arith.constant 0 : index
    %4 = vector.load %arg2[%c0_2, %c0_3] : memref<8x1024xf32, #tpu.memory_space<vmem>>, vector<8x1024xf32>
    %5 = arith.truncf %4 : vector<8x1024xf32> to vector<8x1024xbf16>
    %c0_4 = arith.constant 0 : index
    %c0_5 = arith.constant 0 : index
    %6 = vector.load %arg3[%c0_4, %c0_5] : memref<1024x256xbf16, #tpu.memory_space<vmem>>, vector<1024x256xbf16>
    %cst = arith.constant dense<0.000000e+00> : vector<8x256xf32>
    %7 = tpu.matmul %5, %6, %cst {dimension_numbers = #tpu.dot_dimension_numbers<[1], [0], [0], [1], [0, 0, 1, 1], [], []>} : vector<8x1024xbf16>, vector<1024x256xbf16>, vector<8x256xf32> -> vector<8x256xf32>
    %8 = arith.addf %3, %7 : vector<8x256xf32>
    %c0_6 = arith.constant 0 : index
    %c0_7 = arith.constant 0 : index
    %9 = vector.load %arg10[%c0_6, %c0_7] : memref<8x256xf32, #tpu.memory_space<vmem>>, vector<8x256xf32>
    tpu.vector_store %arg10[%c0_6, %c0_7], %8 {strides = array<i32>} : memref<8x256xf32, #tpu.memory_space<vmem>>, vector<8x256xf32>,
    %c0_i32_8 = arith.constant 0 : i32
    %10 = arith.cmpi eq, %arg1, %c0_i32_8 : i32
    %11 = arith.extui %10 : i1 to i32
    %c0_i32_9 = arith.constant 0 : i32
    %12 = arith.cmpi ne, %11, %c0_i32_9 : i32
    scf.if %12 {
      %c0_10 = arith.constant 0 : index
      %c0_11 = arith.constant 0 : index
      %13 = vector.load %arg10[%c0_10, %c0_11] : memref<8x256xf32, #tpu.memory_space<vmem>>, vector<8x256xf32>
      %c0_12 = arith.constant 0 : index
      %c0_13 = arith.constant 0 : index
      %14 = vector.load %arg4[%c0_12, %c0_13] : memref<1x256xf32, #tpu.memory_space<vmem>>, vector<1x256xf32>
      %15 = vector.broadcast %14 : vector<1x256xf32> to vector<8x256xf32>
      %16 = arith.addf %13, %15 : vector<8x256xf32>
      %cst_14 = arith.constant 0.000000e+00 : f32
      %17 = vector.broadcast %cst_14 : f32 to vector<8x256xf32>
      %18 = arith.maximumf %16, %17 : vector<8x256xf32>
      %19 = arith.truncf %18 : vector<8x256xf32> to vector<8x256xbf16>
      %c0_15 = arith.constant 0 : index
      %c0_16 = arith.constant 0 : index
      %20 = vector.load %arg5[%c0_15, %c0_16] : memref<256x128xbf16, #tpu.memory_space<vmem>>, vector<256x128xbf16>
      %cst_17 = arith.constant dense<0.000000e+00> : vector<8x128xf32>
      %21 = tpu.matmul %19, %20, %cst_17 {dimension_numbers = #tpu.dot_dimension_numbers<[1], [0], [0], [1], [0, 0, 1, 1], [], []>} : vector<8x256xbf16>, vector<256x128xbf16>, vector<8x128xf32> -> vector<8x128xf32>
      %c0_18 = arith.constant 0 : index
      %c0_19 = arith.constant 0 : index
      %22 = vector.load %arg6[%c0_18, %c0_19] : memref<1x128xf32, #tpu.memory_space<vmem>>, vector<1x128xf32>
      %23 = vector.broadcast %22 : vector<1x128xf32> to vector<8x128xf32>
      %24 = arith.addf %21, %23 : vector<8x128xf32>
      %cst_20 = arith.constant 0.000000e+00 : f32
      %25 = vector.broadcast %cst_20 : f32 to vector<8x128xf32>
      %26 = arith.maximumf %24, %25 : vector<8x128xf32>
      %27 = arith.truncf %26 : vector<8x128xf32> to vector<8x128xbf16>
      %c0_21 = arith.constant 0 : index
      %c0_22 = arith.constant 0 : index
      %28 = vector.load %arg7[%c0_21, %c0_22] : memref<128x128xbf16, #tpu.memory_space<vmem>>, vector<128x128xbf16>
      %cst_23 = arith.constant dense<0.000000e+00> : vector<8x128xf32>
      %29 = tpu.matmul %27, %28, %cst_23 {dimension_numbers = #tpu.dot_dimension_numbers<[1], [0], [0], [1], [0, 0, 1, 1], [], []>} : vector<8x128xbf16>, vector<128x128xbf16>, vector<8x128xf32> -> vector<8x128xf32>
      %c0_24 = arith.constant 0 : index
      %c0_25 = arith.constant 0 : index
      %30 = vector.load %arg8[%c0_24, %c0_25] : memref<1x128xf32, #tpu.memory_space<vmem>>, vector<1x128xf32>
      %31 = vector.broadcast %30 : vector<1x128xf32> to vector<8x128xf32>
      %32 = arith.addf %29, %31 : vector<8x128xf32>
      %c0_26 = arith.constant 0 : index
      %c0_27 = arith.constant 0 : index
      %33 = vector.load %arg9[%c0_26, %c0_27] : memref<8x128xf32, #tpu.memory_space<vmem>>, vector<8x128xf32>
      tpu.vector_store %arg9[%c0_26, %c0_27], %32 {strides = array<i32>} : memref<8x128xf32, #tpu.memory_space<vmem>>, vector<8x128xf32>,
    } else {
    }
    return
  }
  func.func @transform_0(%arg0: i32, %arg1: i32) -> (i32, i32) {
    %c0_i32 = arith.constant 0 : i32
    return %arg0, %arg1 : i32, i32
  }
  func.func @transform_1(%arg0: i32, %arg1: i32) -> (i32, i32) {
    %c0_i32 = arith.constant 0 : i32
    %c0_i32_0 = arith.constant 0 : i32
    return %arg1, %c0_i32 : i32, i32
  }
  func.func @transform_2(%arg0: i32, %arg1: i32) -> (i32, i32) {
    %c0_i32 = arith.constant 0 : i32
    %c0_i32_0 = arith.constant 0 : i32
    %c0_i32_1 = arith.constant 0 : i32
    return %c0_i32, %c0_i32_0 : i32, i32
  }
  func.func @transform_3(%arg0: i32, %arg1: i32) -> (i32, i32) {
    %c0_i32 = arith.constant 0 : i32
    %c0_i32_0 = arith.constant 0 : i32
    %c0_i32_1 = arith.constant 0 : i32
    return %c0_i32, %c0_i32_0 : i32, i32
  }
  func.func @transform_4(%arg0: i32, %arg1: i32) -> (i32, i32) {
    %c0_i32 = arith.constant 0 : i32
    %c0_i32_0 = arith.constant 0 : i32
    %c0_i32_1 = arith.constant 0 : i32
    return %c0_i32, %c0_i32_0 : i32, i32
  }
  func.func @transform_5(%arg0: i32, %arg1: i32) -> (i32, i32) {
    %c0_i32 = arith.constant 0 : i32
    %c0_i32_0 = arith.constant 0 : i32
    %c0_i32_1 = arith.constant 0 : i32
    return %c0_i32, %c0_i32_0 : i32, i32
  }
  func.func @transform_6(%arg0: i32, %arg1: i32) -> (i32, i32) {
    %c0_i32 = arith.constant 0 : i32
    %c0_i32_0 = arith.constant 0 : i32
    %c0_i32_1 = arith.constant 0 : i32
    return %c0_i32, %c0_i32_0 : i32, i32
  }
  func.func @transform_7(%arg0: i32, %arg1: i32) -> (i32, i32) {
    %c0_i32 = arith.constant 0 : i32
    %c0_i32_0 = arith.constant 0 : i32
    return %arg0, %c0_i32 : i32, i32
  }
}

</mosaic_0001>

<llo_original>
// kernel: tpu_custom_call.1
$region0: #{tpu_custom_call.1}
  #allocation0 [shape = 'u32[]', space=smem, size = 0x4, offset = 0x4, fixed_abs, tag = 'smem constant byte address 0x4 - core index']
  #allocation1 [shape = 'u32[144,128]{1,0:T(1,128)}', space=vmem, size = 0x12000, scoped, tag = 'internal scratch']
  #allocation2 [shape = 'f32[8,256]{1,0:T(8,128)}', space=vmem, size = 0x2000, scoped, tag = 'scratch operand']
  %s0 = inlined_call_operand.hbm [shape: f32[2,1024], index: 0, kind: input, shape index: {}]
  %s1 = inlined_call_operand.hbm [shape: bf16[1024,256], index: 1, kind: input, shape index: {}]
  %s2 = inlined_call_operand.vmem [shape: f32[1,256], index: 2, kind: input, shape index: {}]
  %s3 = inlined_call_operand.hbm [shape: bf16[256,128], index: 3, kind: input, shape index: {}]
  %s4 = inlined_call_operand.vmem [shape: f32[1,128], index: 4, kind: input, shape index: {}]
  %s5 = inlined_call_operand.hbm [shape: bf16[128,128], index: 5, kind: input, shape index: {}]
  %s6 = inlined_call_operand.vmem [shape: f32[1,128], index: 6, kind: input, shape index: {}]
  %s7 = inlined_call_operand.hbm [shape: f32[8,128], index: 7, kind: output, shape index: {}]
  %s8 = sld [smem:[#allocation0]]
  $region62: #{tpu_custom_call.1} parent=0
    _
  %s10 = ssub.s32 1, %s8
  %s11 = scalar_select 0, %s10, %s8
  $region1: #{tpu_custom_call.1} parent=0
    #allocation3 [shape = 'u8[32768]{0}', space=vmem, size = 0x8000, scoped, tag = 'input window, operand 0, single buffered']
    #allocation4 [shape = 's32[1]{0}', space=sflag, size = 0x4, scoped, tag = 'scoped memory for tpu_custom_call.1']
    #allocation5 [shape = 's32[1]{0}', space=sflag, size = 0x4, scoped, tag = 'scoped memory for tpu_custom_call.1']
    #allocation6 [shape = 'u8[524288]{0}', space=vmem, size = 0x80000, scoped, tag = 'input window, operand 1, single buffered']
    #allocation7 [shape = 's32[1]{0}', space=sflag, size = 0x4, scoped, tag = 'scoped memory for tpu_custom_call.1']
    #allocation8 [shape = 'u8[65536]{0}', space=vmem, size = 0x10000, scoped, tag = 'input window, operand 3, single buffered']
    #allocation9 [shape = 'u8[32768]{0}', space=vmem, size = 0x8000, scoped, tag = 'input window, operand 5, single buffered']
    #allocation10 [shape = 's32[1]{0}', space=sflag, size = 0x4, scoped, tag = 'scoped memory for tpu_custom_call.1']
    #allocation11 [shape = 'u8[4096]{0}', space=vmem, size = 0x1000, scoped, tag = 'output window, operand 0, single buffered']
    %12 = vsyncpa [#allocation4], 0
    %13 = vsyncpa [#allocation7], 0
    %14 = vsyncpa [#allocation10], 0
    %15 = vsyncpa [#allocation5], 0
    // Predicated region
    $region2: #{tpu_custom_call.1} parent=1 // pred_check
      _
    $region3: #{tpu_custom_call.1} parent=1 // pred_check_branch
      %17 = sbr.rel (0) target = $region5
    $region4: #{tpu_custom_call.1} parent=1 // pred_region
      %s19 = ssub.s32 1024, 256
      %20 = vsyncadd [#allocation4], %s19
      %s21 = sshll.u32 [#allocation3], 4
      %s22 = int_to_ptr.vmem [resolvable:$true] %s21
      %27 = dma.hbm_to_vmem [thread:$0]  %s0, 256, %s22, [#allocation4], 256, 256, 16
    $region5: #{tpu_custom_call.1} parent=1 // pred_fallthru
      _
    // Predicated region
    $region6: #{tpu_custom_call.1} parent=1 // pred_check
      _
    $region7: #{tpu_custom_call.1} parent=1 // pred_check_branch
      %29 = sbr.rel (0) target = $region9
    $region8: #{tpu_custom_call.1} parent=1 // pred_region
      %s31 = ssub.s32 16384, 16384
      %32 = vsyncadd [#allocation7], %s31
      %s33 = sshll.u32 [#allocation6], 4
      %s34 = int_to_ptr.vmem [resolvable:$true] %s33
      %39 = dma.hbm_to_vmem [thread:$0]  %s1, 16384, %s34, [#allocation7], 128, 128, 8
    $region9: #{tpu_custom_call.1} parent=1 // pred_fallthru
      _
    // Predicated region
    $region10: #{tpu_custom_call.1} parent=1 // pred_check
      _
    $region11: #{tpu_custom_call.1} parent=1 // pred_check_branch
      %41 = sbr.rel (0) target = $region13
    $region12: #{tpu_custom_call.1} parent=1 // pred_region
      _
    $region13: #{tpu_custom_call.1} parent=1 // pred_fallthru
      _
    // Predicated region
    $region14: #{tpu_custom_call.1} parent=1 // pred_check
      _
    $region15: #{tpu_custom_call.1} parent=1 // pred_check_branch
      %43 = sbr.rel (0) target = $region17
    $region16: #{tpu_custom_call.1} parent=1 // pred_region
      %s45 = ssub.s32 2048, 2048
      %46 = vsyncadd [#allocation7], %s45
      %s47 = sshll.u32 [#allocation8], 4
      %s48 = int_to_ptr.vmem [resolvable:$true] %s47
      %53 = dma.hbm_to_vmem [thread:$0]  %s3, 2048, %s48, [#allocation7], 64, 64, 4
    $region17: #{tpu_custom_call.1} parent=1 // pred_fallthru
      _
    // Predicated region
    $region18: #{tpu_custom_call.1} parent=1 // pred_check
      _
    $region19: #{tpu_custom_call.1} parent=1 // pred_check_branch
      %55 = sbr.rel (0) target = $region21
    $region20: #{tpu_custom_call.1} parent=1 // pred_region
      _
    $region21: #{tpu_custom_call.1} parent=1 // pred_fallthru
      _
    // Predicated region
    $region22: #{tpu_custom_call.1} parent=1 // pred_check
      _
    $region23: #{tpu_custom_call.1} parent=1 // pred_check_branch
      %57 = sbr.rel (0) target = $region25
    $region24: #{tpu_custom_call.1} parent=1 // pred_region
      %s59 = ssub.s32 1024, 1024
      %60 = vsyncadd [#allocation10], %s59
      %s61 = sshll.u32 [#allocation9], 4
      %s62 = int_to_ptr.vmem [resolvable:$true] %s61
      %67 = dma.hbm_to_vmem [thread:$0]  %s5, 1024, %s62, [#allocation10], 64, 64, 4
    $region25: #{tpu_custom_call.1} parent=1 // pred_fallthru
      _
    // Predicated region
    $region26: #{tpu_custom_call.1} parent=1 // pred_check
      _
    $region27: #{tpu_custom_call.1} parent=1 // pred_check_branch
      %69 = sbr.rel (0) target = $region29
    $region28: #{tpu_custom_call.1} parent=1 // pred_region
      _
    $region29: #{tpu_custom_call.1} parent=1 // pred_fallthru
      _
    // Predicated region
    $region30: #{tpu_custom_call.1} parent=1 // pred_check
      _
    $region31: #{tpu_custom_call.1} parent=1 // pred_check_branch
      %71 = sbr.rel (0) target = $region33
    $region32: #{tpu_custom_call.1} parent=1 // pred_region
      %72 = dma.done [#allocation4], 1024
    $region33: #{tpu_custom_call.1} parent=1 // pred_fallthru
      _
    // Predicated region
    $region34: #{tpu_custom_call.1} parent=1 // pred_check
      _
    $region35: #{tpu_custom_call.1} parent=1 // pred_check_branch
      %74 = sbr.rel (0) target = $region37
    $region36: #{tpu_custom_call.1} parent=1 // pred_region
      %75 = dma.done [#allocation7], 16384
    $region37: #{tpu_custom_call.1} parent=1 // pred_fallthru
      _
    // Predicated region
    $region38: #{tpu_custom_call.1} parent=1 // pred_check
      _
    $region39: #{tpu_custom_call.1} parent=1 // pred_check_branch
      %77 = sbr.rel (0) target = $region41
    $region40: #{tpu_custom_call.1} parent=1 // pred_region
      %78 = dma.done [#allocation7], 2048
    $region41: #{tpu_custom_call.1} parent=1 // pred_fallthru
      _
    // Predicated region
    $region42: #{tpu_custom_call.1} parent=1 // pred_check
      _
    $region43: #{tpu_custom_call.1} parent=1 // pred_check_branch
      %80 = sbr.rel (0) target = $region45
    $region44: #{tpu_custom_call.1} parent=1 // pred_region
      %81 = dma.done [#allocation10], 1024
    $region45: #{tpu_custom_call.1} parent=1 // pred_fallthru
      _
    %p83 = scmp.eq.s32.totalorder 0, 0
    // Predicated region
    $region46: #{tpu_custom_call.1} parent=1 // pred_check
      %p84 = pneg %p83
    $region47: #{tpu_custom_call.1} parent=1 // pred_check_branch
      %86 = sbr.rel (%p84) target = $region49
    $region48: #{tpu_custom_call.1} parent=1 // pred_region
      %87 = vst [vmem:[#allocation2] sm:$0xff] 0.0
      %88 = vst [vmem:[#allocation2 + $0x8] sm:$0xff] 0.0
    $region49: #{tpu_custom_call.1} parent=1 // pred_fallthru
      _
    %v89 = vld [vmem:[#allocation2] sm:$0xff]
    %v90 = vld [vmem:[#allocation2 + $0x8] sm:$0xff]
    %v91 = vld [vmem:[#allocation3] sm:$0xff]
    %v92 = vld [vmem:[#allocation3 + $0x8] sm:$0xff]
    %v93 = vld [vmem:[#allocation3 + $0x10] sm:$0xff]
    %v94 = vld [vmem:[#allocation3 + $0x18] sm:$0xff]
    %v95 = vld [vmem:[#allocation3 + $0x20] sm:$0xff]
    %v96 = vld [vmem:[#allocation3 + $0x28] sm:$0xff]
    %v97 = vld [vmem:[#allocation3 + $0x30] sm:$0xff]
    %v98 = vld [vmem:[#allocation3 + $0x38] sm:$0xff]
    %v107 = vcombine.low %v91, %v93
    %v108 = vcombine.high %v91, %v93
    %v109 = vcombine.low %v95, %v97
    %v110 = vcombine.high %v95, %v97
    %v112 = vunpack.c.l.s4 1983009808
    %v113 = vunpack.c.0.s8 %v112
    %v114 = vlaneseq
    %v115 = vshrl.u32 %v114, 7
    %v116 = vsub.s32 %v113, %v115
    %v117 = vrot.slane %v107, %v116
    %v119 = vunpack.c.l.s4 1983009808
    %v120 = vunpack.c.0.s8 %v119
    %v121 = vlaneseq
    %v122 = vshrl.u32 %v121, 7
    %v123 = vsub.s32 %v120, %v122
    %v124 = vrot.slane %v108, %v123
    %v126 = vunpack.c.l.s4 1983009808
    %v127 = vunpack.c.0.s8 %v126
    %v128 = vlaneseq
    %v129 = vshrl.u32 %v128, 7
    %v130 = vsub.s32 %v127, %v129
    %v131 = vrot.slane %v109, %v130
    %v133 = vunpack.c.l.s4 1983009808
    %v134 = vunpack.c.0.s8 %v133
    %v135 = vlaneseq
    %v136 = vshrl.u32 %v135, 7
    %v137 = vsub.s32 %v134, %v136
    %v138 = vrot.slane %v110, %v137
    %v139 = vcombine.low %v117, %v131
    %v140 = vcombine.high %v117, %v131
    %v141 = vcombine.low %v124, %v138
    %v142 = vcombine.high %v124, %v138
    %v143 = vcombine.low %v92, %v94
    %v144 = vcombine.high %v92, %v94
    %v145 = vcombine.low %v96, %v98
    %v146 = vcombine.high %v96, %v98
    %v148 = vunpack.c.l.s4 1983009808
    %v149 = vunpack.c.0.s8 %v148
    %v150 = vlaneseq
    %v151 = vshrl.u32 %v150, 7
    %v152 = vsub.s32 %v149, %v151
    %v153 = vrot.slane %v143, %v152
    %v155 = vunpack.c.l.s4 1983009808
    %v156 = vunpack.c.0.s8 %v155
    %v157 = vlaneseq
    %v158 = vshrl.u32 %v157, 7
    %v159 = vsub.s32 %v156, %v158
    %v160 = vrot.slane %v144, %v159
    %v162 = vunpack.c.l.s4 1983009808
    %v163 = vunpack.c.0.s8 %v162
    %v164 = vlaneseq
    %v165 = vshrl.u32 %v164, 7
    %v166 = vsub.s32 %v163, %v165
    %v167 = vrot.slane %v145, %v166
    %v169 = vunpack.c.l.s4 1983009808
    %v170 = vunpack.c.0.s8 %v169
    %v171 = vlaneseq
    %v172 = vshrl.u32 %v171, 7
    %v173 = vsub.s32 %v170, %v172
    %v174 = vrot.slane %v146, %v173
    %v175 = vcombine.low %v153, %v167
    %v176 = vcombine.high %v153, %v167
    %v177 = vcombine.low %v160, %v174
    %v178 = vcombine.high %v160, %v174
    %v187 = vpack.c.bf16 %v139, %v139
    %v188 = vpack.c.bf16 %v140, %v140
    %v189 = vpack.c.bf16 %v141, %v141
    %v190 = vpack.c.bf16 %v142, %v142
    %v191 = vpack.c.bf16 %v175, %v175
    %v192 = vpack.c.bf16 %v176, %v176
    %v193 = vpack.c.bf16 %v177, %v177
    %v194 = vpack.c.bf16 %v178, %v178
    %v195 = vld [vmem:[#allocation6] sm:$0xff]
    %v196 = vld [vmem:[#allocation6 + $0x8] sm:$0xff]
    %v197 = vld [vmem:[#allocation6 + $0x10] sm:$0xff]
    %v198 = vld [vmem:[#allocation6 + $0x18] sm:$0xff]
    %v199 = vld [vmem:[#allocation6 + $0x20] sm:$0xff]
    %v200 = vld [vmem:[#allocation6 + $0x28] sm:$0xff]
    %v201 = vld [vmem:[#allocation6 + $0x30] sm:$0xff]
    %v202 = vld [vmem:[#allocation6 + $0x38] sm:$0xff]
    %v203 = vld [vmem:[#allocation6 + $0x40] sm:$0xff]
    %v204 = vld [vmem:[#allocation6 + $0x48] sm:$0xff]
    %v205 = vld [vmem:[#allocation6 + $0x50] sm:$0xff]
    %v206 = vld [vmem:[#allocation6 + $0x58] sm:$0xff]
    %v207 = vld [vmem:[#allocation6 + $0x60] sm:$0xff]
    %v208 = vld [vmem:[#allocation6 + $0x68] sm:$0xff]
    %v209 = vld [vmem:[#allocation6 + $0x70] sm:$0xff]
    %v210 = vld [vmem:[#allocation6 + $0x78] sm:$0xff]
    %v211 = vld [vmem:[#allocation6 + $0x80] sm:$0xff]
    %v212 = vld [vmem:[#allocation6 + $0x88] sm:$0xff]
    %v213 = vld [vmem:[#allocation6 + $0x90] sm:$0xff]
    %v214 = vld [vmem:[#allocation6 + $0x98] sm:$0xff]
    %v215 = vld [vmem:[#allocation6 + $0xa0] sm:$0xff]
    %v216 = vld [vmem:[#allocation6 + $0xa8] sm:$0xff]
    %v217 = vld [vmem:[#allocation6 + $0xb0] sm:$0xff]
    %v218 = vld [vmem:[#allocation6 + $0xb8] sm:$0xff]
    %v219 = vld [vmem:[#allocation6 + $0xc0] sm:$0xff]
    %v220 = vld [vmem:[#allocation6 + $0xc8] sm:$0xff]
    %v221 = vld [vmem:[#allocation6 + $0xd0] sm:$0xff]
    %v222 = vld [vmem:[#allocation6 + $0xd8] sm:$0xff]
    %v223 = vld [vmem:[#allocation6 + $0xe0] sm:$0xff]
    %v224 = vld [vmem:[#allocation6 + $0xe8] sm:$0xff]
    %v225 = vld [vmem:[#allocation6 + $0xf0] sm:$0xff]
    %v226 = vld [vmem:[#allocation6 + $0xf8] sm:$0xff]
    %v227 = vld [vmem:[#allocation6 + $0x100] sm:$0xff]
    %v228 = vld [vmem:[#allocation6 + $0x108] sm:$0xff]
    %v229 = vld [vmem:[#allocation6 + $0x110] sm:$0xff]
    %v230 = vld [vmem:[#allocation6 + $0x118] sm:$0xff]
    %v231 = vld [vmem:[#allocation6 + $0x120] sm:$0xff]
    %v232 = vld [vmem:[#allocation6 + $0x128] sm:$0xff]
    %v233 = vld [vmem:[#allocation6 + $0x130] sm:$0xff]
    %v234 = vld [vmem:[#allocation6 + $0x138] sm:$0xff]
    %v235 = vld [vmem:[#allocation6 + $0x140] sm:$0xff]
    %v236 = vld [vmem:[#allocation6 + $0x148] sm:$0xff]
    %v237 = vld [vmem:[#allocation6 + $0x150] sm:$0xff]
    %v238 = vld [vmem:[#allocation6 + $0x158] sm:$0xff]
    %v239 = vld [vmem:[#allocation6 + $0x160] sm:$0xff]
    %v240 = vld [vmem:[#allocation6 + $0x168] sm:$0xff]
    %v241 = vld [vmem:[#allocation6 + $0x170] sm:$0xff]
    %v242 = vld [vmem:[#allocation6 + $0x178] sm:$0xff]
    %v243 = vld [vmem:[#allocation6 + $0x180] sm:$0xff]
    %v244 = vld [vmem:[#allocation6 + $0x188] sm:$0xff]
    %v245 = vld [vmem:[#allocation6 + $0x190] sm:$0xff]
    %v246 = vld [vmem:[#allocation6 + $0x198] sm:$0xff]
    %v247 = vld [vmem:[#allocation6 + $0x1a0] sm:$0xff]
    %v248 = vld [vmem:[#allocation6 + $0x1a8] sm:$0xff]
    %v249 = vld [vmem:[#allocation6 + $0x1b0] sm:$0xff]
    %v250 = vld [vmem:[#allocation6 + $0x1b8] sm:$0xff]
    %v251 = vld [vmem:[#allocation6 + $0x1c0] sm:$0xff]
    %v252 = vld [vmem:[#allocation6 + $0x1c8] sm:$0xff]
    %v253 = vld [vmem:[#allocation6 + $0x1d0] sm:$0xff]
    %v254 = vld [vmem:[#allocation6 + $0x1d8] sm:$0xff]
    %v255 = vld [vmem:[#allocation6 + $0x1e0] sm:$0xff]
    %v256 = vld [vmem:[#allocation6 + $0x1e8] sm:$0xff]
    %v257 = vld [vmem:[#allocation6 + $0x1f0] sm:$0xff]
    %v258 = vld [vmem:[#allocation6 + $0x1f8] sm:$0xff]
    %v259 = vld [vmem:[#allocation6 + $0x200] sm:$0xff]
    %v260 = vld [vmem:[#allocation6 + $0x208] sm:$0xff]
    %v261 = vld [vmem:[#allocation6 + $0x210] sm:$0xff]
    %v262 = vld [vmem:[#allocation6 + $0x218] sm:$0xff]
    %v263 = vld [vmem:[#allocation6 + $0x220] sm:$0xff]
    %v264 = vld [vmem:[#allocation6 + $0x228] sm:$0xff]
    %v265 = vld [vmem:[#allocation6 + $0x230] sm:$0xff]
    %v266 = vld [vmem:[#allocation6 + $0x238] sm:$0xff]
    %v267 = vld [vmem:[#allocation6 + $0x240] sm:$0xff]
    %v268 = vld [vmem:[#allocation6 + $0x248] sm:$0xff]
    %v269 = vld [vmem:[#allocation6 + $0x250] sm:$0xff]
    %v270 = vld [vmem:[#allocation6 + $0x258] sm:$0xff]
    %v271 = vld [vmem:[#allocation6 + $0x260] sm:$0xff]
    %v272 = vld [vmem:[#allocation6 + $0x268] sm:$0xff]
    %v273 = vld [vmem:[#allocation6 + $0x270] sm:$0xff]
    %v274 = vld [vmem:[#allocation6 + $0x278] sm:$0xff]
    %v275 = vld [vmem:[#allocation6 + $0x280] sm:$0xff]
    %v276 = vld [vmem:[#allocation6 + $0x288] sm:$0xff]
    %v277 = vld [vmem:[#allocation6 + $0x290] sm:$0xff]
    %v278 = vld [vmem:[#allocation6 + $0x298] sm:$0xff]
    %v279 = vld [vmem:[#allocation6 + $0x2a0] sm:$0xff]
    %v280 = vld [vmem:[#allocation6 + $0x2a8] sm:$0xff]
    %v281 = vld [vmem:[#allocation6 + $0x2b0] sm:$0xff]
    %v282 = vld [vmem:[#allocation6 + $0x2b8] sm:$0xff]
    %v283 = vld [vmem:[#allocation6 + $0x2c0] sm:$0xff]
    %v284 = vld [vmem:[#allocation6 + $0x2c8] sm:$0xff]
    %v285 = vld [vmem:[#allocation6 + $0x2d0] sm:$0xff]
    %v286 = vld [vmem:[#allocation6 + $0x2d8] sm:$0xff]
    %v287 = vld [vmem:[#allocation6 + $0x2e0] sm:$0xff]
    %v288 = vld [vmem:[#allocation6 + $0x2e8] sm:$0xff]
    %v289 = vld [vmem:[#allocation6 + $0x2f0] sm:$0xff]
    %v290 = vld [vmem:[#allocation6 + $0x2f8] sm:$0xff]
    %v291 = vld [vmem:[#allocation6 + $0x300] sm:$0xff]
    %v292 = vld [vmem:[#allocation6 + $0x308] sm:$0xff]
    %v293 = vld [vmem:[#allocation6 + $0x310] sm:$0xff]
    %v294 = vld [vmem:[#allocation6 + $0x318] sm:$0xff]
    %v295 = vld [vmem:[#allocation6 + $0x320] sm:$0xff]
    %v296 = vld [vmem:[#allocation6 + $0x328] sm:$0xff]
    %v297 = vld [vmem:[#allocation6 + $0x330] sm:$0xff]
    %v298 = vld [vmem:[#allocation6 + $0x338] sm:$0xff]
    %v299 = vld [vmem:[#allocation6 + $0x340] sm:$0xff]
    %v300 = vld [vmem:[#allocation6 + $0x348] sm:$0xff]
    %v301 = vld [vmem:[#allocation6 + $0x350] sm:$0xff]
    %v302 = vld [vmem:[#allocation6 + $0x358] sm:$0xff]
    %v303 = vld [vmem:[#allocation6 + $0x360] sm:$0xff]
    %v304 = vld [vmem:[#allocation6 + $0x368] sm:$0xff]
    %v305 = vld [vmem:[#allocation6 + $0x370] sm:$0xff]
    %v306 = vld [vmem:[#allocation6 + $0x378] sm:$0xff]
    %v307 = vld [vmem:[#allocation6 + $0x380] sm:$0xff]
    %v308 = vld [vmem:[#allocation6 + $0x388] sm:$0xff]
    %v309 = vld [vmem:[#allocation6 + $0x390] sm:$0xff]
    %v310 = vld [vmem:[#allocation6 + $0x398] sm:$0xff]
    %v311 = vld [vmem:[#allocation6 + $0x3a0] sm:$0xff]
    %v312 = vld [vmem:[#allocation6 + $0x3a8] sm:$0xff]
    %v313 = vld [vmem:[#allocation6 + $0x3b0] sm:$0xff]
    %v314 = vld [vmem:[#allocation6 + $0x3b8] sm:$0xff]
    %v315 = vld [vmem:[#allocation6 + $0x3c0] sm:$0xff]
    %v316 = vld [vmem:[#allocation6 + $0x3c8] sm:$0xff]
    %v317 = vld [vmem:[#allocation6 + $0x3d0] sm:$0xff]
    %v318 = vld [vmem:[#allocation6 + $0x3d8] sm:$0xff]
    %v319 = vld [vmem:[#allocation6 + $0x3e0] sm:$0xff]
    %v320 = vld [vmem:[#allocation6 + $0x3e8] sm:$0xff]
    %v321 = vld [vmem:[#allocation6 + $0x3f0] sm:$0xff]
    %v322 = vld [vmem:[#allocation6 + $0x3f8] sm:$0xff]
    %v451 = vunpack.c.l.b16 %v195
    %v452 = vunpack.c.h.b16 %v195
    %v453 = vunpack.c.l.b16 %v196
    %v454 = vunpack.c.h.b16 %v196
    %v455 = vunpack.c.l.b16 %v197
    %v456 = vunpack.c.h.b16 %v197
    %v457 = vunpack.c.l.b16 %v198
    %v458 = vunpack.c.h.b16 %v198
    %v459 = vunpack.c.l.b16 %v199
    %v460 = vunpack.c.h.b16 %v199
    %v461 = vunpack.c.l.b16 %v200
    %v462 = vunpack.c.h.b16 %v200
    %v463 = vunpack.c.l.b16 %v201
    %v464 = vunpack.c.h.b16 %v201
    %v465 = vunpack.c.l.b16 %v202
    %v466 = vunpack.c.h.b16 %v202
    %v467 = vunpack.c.l.b16 %v203
    %v468 = vunpack.c.h.b16 %v203
    %v469 = vunpack.c.l.b16 %v204
    %v470 = vunpack.c.h.b16 %v204
    %v471 = vunpack.c.l.b16 %v205
    %v472 = vunpack.c.h.b16 %v205
    %v473 = vunpack.c.l.b16 %v206
    %v474 = vunpack.c.h.b16 %v206
    %v475 = vunpack.c.l.b16 %v207
    %v476 = vunpack.c.h.b16 %v207
    %v477 = vunpack.c.l.b16 %v208
    %v478 = vunpack.c.h.b16 %v208
    %v479 = vunpack.c.l.b16 %v209
    %v480 = vunpack.c.h.b16 %v209
    %v481 = vunpack.c.l.b16 %v210
    %v482 = vunpack.c.h.b16 %v210
    %v483 = vunpack.c.l.b16 %v211
    %v484 = vunpack.c.h.b16 %v211
    %v485 = vunpack.c.l.b16 %v212
    %v486 = vunpack.c.h.b16 %v212
    %v487 = vunpack.c.l.b16 %v213
    %v488 = vunpack.c.h.b16 %v213
    %v489 = vunpack.c.l.b16 %v214
    %v490 = vunpack.c.h.b16 %v214
    %v491 = vunpack.c.l.b16 %v215
    %v492 = vunpack.c.h.b16 %v215
    %v493 = vunpack.c.l.b16 %v216
    %v494 = vunpack.c.h.b16 %v216
    %v495 = vunpack.c.l.b16 %v217
    %v496 = vunpack.c.h.b16 %v217
    %v497 = vunpack.c.l.b16 %v218
    %v498 = vunpack.c.h.b16 %v218
    %v499 = vunpack.c.l.b16 %v219
    %v500 = vunpack.c.h.b16 %v219
    %v501 = vunpack.c.l.b16 %v220
    %v502 = vunpack.c.h.b16 %v220
    %v503 = vunpack.c.l.b16 %v221
    %v504 = vunpack.c.h.b16 %v221
    %v505 = vunpack.c.l.b16 %v222
    %v506 = vunpack.c.h.b16 %v222
    %v507 = vunpack.c.l.b16 %v223
    %v508 = vunpack.c.h.b16 %v223
    %v509 = vunpack.c.l.b16 %v224
    %v510 = vunpack.c.h.b16 %v224
    %v511 = vunpack.c.l.b16 %v225
    %v512 = vunpack.c.h.b16 %v225
    %v513 = vunpack.c.l.b16 %v226
    %v514 = vunpack.c.h.b16 %v226
    %v515 = vunpack.c.l.b16 %v227
    %v516 = vunpack.c.h.b16 %v227
    %v517 = vunpack.c.l.b16 %v228
    %v518 = vunpack.c.h.b16 %v228
    %v519 = vunpack.c.l.b16 %v229
    %v520 = vunpack.c.h.b16 %v229
    %v521 = vunpack.c.l.b16 %v230
    %v522 = vunpack.c.h.b16 %v230
    %v523 = vunpack.c.l.b16 %v231
    %v524 = vunpack.c.h.b16 %v231
    %v525 = vunpack.c.l.b16 %v232
    %v526 = vunpack.c.h.b16 %v232
    %v527 = vunpack.c.l.b16 %v233
    %v528 = vunpack.c.h.b16 %v233
    %v529 = vunpack.c.l.b16 %v234
    %v530 = vunpack.c.h.b16 %v234
    %v531 = vunpack.c.l.b16 %v235
    %v532 = vunpack.c.h.b16 %v235
    %v533 = vunpack.c.l.b16 %v236
    %v534 = vunpack.c.h.b16 %v236
    %v535 = vunpack.c.l.b16 %v237
    %v536 = vunpack.c.h.b16 %v237
    %v537 = vunpack.c.l.b16 %v238
    %v538 = vunpack.c.h.b16 %v238
    %v539 = vunpack.c.l.b16 %v239
    %v540 = vunpack.c.h.b16 %v239
    %v541 = vunpack.c.l.b16 %v240
    %v542 = vunpack.c.h.b16 %v240
    %v543 = vunpack.c.l.b16 %v241
    %v544 = vunpack.c.h.b16 %v241
    %v545 = vunpack.c.l.b16 %v242
    %v546 = vunpack.c.h.b16 %v242
    %v547 = vunpack.c.l.b16 %v243
    %v548 = vunpack.c.h.b16 %v243
    %v549 = vunpack.c.l.b16 %v244
    %v550 = vunpack.c.h.b16 %v244
    %v551 = vunpack.c.l.b16 %v245
    %v552 = vunpack.c.h.b16 %v245
    %v553 = vunpack.c.l.b16 %v246
    %v554 = vunpack.c.h.b16 %v246
    %v555 = vunpack.c.l.b16 %v247
    %v556 = vunpack.c.h.b16 %v247
    %v557 = vunpack.c.l.b16 %v248
    %v558 = vunpack.c.h.b16 %v248
    %v559 = vunpack.c.l.b16 %v249
    %v560 = vunpack.c.h.b16 %v249
    %v561 = vunpack.c.l.b16 %v250
    %v562 = vunpack.c.h.b16 %v250
    %v563 = vunpack.c.l.b16 %v251
    %v564 = vunpack.c.h.b16 %v251
    %v565 = vunpack.c.l.b16 %v252
    %v566 = vunpack.c.h.b16 %v252
    %v567 = vunpack.c.l.b16 %v253
    %v568 = vunpack.c.h.b16 %v253
    %v569 = vunpack.c.l.b16 %v254
    %v570 = vunpack.c.h.b16 %v254
    %v571 = vunpack.c.l.b16 %v255
    %v572 = vunpack.c.h.b16 %v255
    %v573 = vunpack.c.l.b16 %v256
    %v574 = vunpack.c.h.b16 %v256
    %v575 = vunpack.c.l.b16 %v257
    %v576 = vunpack.c.h.b16 %v257
    %v577 = vunpack.c.l.b16 %v258
    %v578 = vunpack.c.h.b16 %v258
    %v579 = vunpack.c.l.b16 %v259
    %v580 = vunpack.c.h.b16 %v259
    %v581 = vunpack.c.l.b16 %v260
    %v582 = vunpack.c.h.b16 %v260
    %v583 = vunpack.c.l.b16 %v261
    %v584 = vunpack.c.h.b16 %v261
    %v585 = vunpack.c.l.b16 %v262
    %v586 = vunpack.c.h.b16 %v262
    %v587 = vunpack.c.l.b16 %v263
    %v588 = vunpack.c.h.b16 %v263
    %v589 = vunpack.c.l.b16 %v264
    %v590 = vunpack.c.h.b16 %v264
    %v591 = vunpack.c.l.b16 %v265
    %v592 = vunpack.c.h.b16 %v265
    %v593 = vunpack.c.l.b16 %v266
    %v594 = vunpack.c.h.b16 %v266
    %v595 = vunpack.c.l.b16 %v267
    %v596 = vunpack.c.h.b16 %v267
    %v597 = vunpack.c.l.b16 %v268
    %v598 = vunpack.c.h.b16 %v268
    %v599 = vunpack.c.l.b16 %v269
    %v600 = vunpack.c.h.b16 %v269
    %v601 = vunpack.c.l.b16 %v270
    %v602 = vunpack.c.h.b16 %v270
    %v603 = vunpack.c.l.b16 %v271
    %v604 = vunpack.c.h.b16 %v271
    %v605 = vunpack.c.l.b16 %v272
    %v606 = vunpack.c.h.b16 %v272
    %v607 = vunpack.c.l.b16 %v273
    %v608 = vunpack.c.h.b16 %v273
    %v609 = vunpack.c.l.b16 %v274
    %v610 = vunpack.c.h.b16 %v274
    %v611 = vunpack.c.l.b16 %v275
    %v612 = vunpack.c.h.b16 %v275
    %v613 = vunpack.c.l.b16 %v276
    %v614 = vunpack.c.h.b16 %v276
    %v615 = vunpack.c.l.b16 %v277
    %v616 = vunpack.c.h.b16 %v277
    %v617 = vunpack.c.l.b16 %v278
    %v618 = vunpack.c.h.b16 %v278
    %v619 = vunpack.c.l.b16 %v279
    %v620 = vunpack.c.h.b16 %v279
    %v621 = vunpack.c.l.b16 %v280
    %v622 = vunpack.c.h.b16 %v280
    %v623 = vunpack.c.l.b16 %v281
    %v624 = vunpack.c.h.b16 %v281
    %v625 = vunpack.c.l.b16 %v282
    %v626 = vunpack.c.h.b16 %v282
    %v627 = vunpack.c.l.b16 %v283
    %v628 = vunpack.c.h.b16 %v283
    %v629 = vunpack.c.l.b16 %v284
    %v630 = vunpack.c.h.b16 %v284
    %v631 = vunpack.c.l.b16 %v285
    %v632 = vunpack.c.h.b16 %v285
    %v633 = vunpack.c.l.b16 %v286
    %v634 = vunpack.c.h.b16 %v286
    %v635 = vunpack.c.l.b16 %v287
    %v636 = vunpack.c.h.b16 %v287
    %v637 = vunpack.c.l.b16 %v288
    %v638 = vunpack.c.h.b16 %v288
    %v639 = vunpack.c.l.b16 %v289
    %v640 = vunpack.c.h.b16 %v289
    %v641 = vunpack.c.l.b16 %v290
    %v642 = vunpack.c.h.b16 %v290
    %v643 = vunpack.c.l.b16 %v291
    %v644 = vunpack.c.h.b16 %v291
    %v645 = vunpack.c.l.b16 %v292
    %v646 = vunpack.c.h.b16 %v292
    %v647 = vunpack.c.l.b16 %v293
    %v648 = vunpack.c.h.b16 %v293
    %v649 = vunpack.c.l.b16 %v294
    %v650 = vunpack.c.h.b16 %v294
    %v651 = vunpack.c.l.b16 %v295
    %v652 = vunpack.c.h.b16 %v295
    %v653 = vunpack.c.l.b16 %v296
    %v654 = vunpack.c.h.b16 %v296
    %v655 = vunpack.c.l.b16 %v297
    %v656 = vunpack.c.h.b16 %v297
    %v657 = vunpack.c.l.b16 %v298
    %v658 = vunpack.c.h.b16 %v298
    %v659 = vunpack.c.l.b16 %v299
    %v660 = vunpack.c.h.b16 %v299
    %v661 = vunpack.c.l.b16 %v300
    %v662 = vunpack.c.h.b16 %v300
    %v663 = vunpack.c.l.b16 %v301
    %v664 = vunpack.c.h.b16 %v301
    %v665 = vunpack.c.l.b16 %v302
    %v666 = vunpack.c.h.b16 %v302
    %v667 = vunpack.c.l.b16 %v303
    %v668 = vunpack.c.h.b16 %v303
    %v669 = vunpack.c.l.b16 %v304
    %v670 = vunpack.c.h.b16 %v304
    %v671 = vunpack.c.l.b16 %v305
    %v672 = vunpack.c.h.b16 %v305
    %v673 = vunpack.c.l.b16 %v306
    %v674 = vunpack.c.h.b16 %v306
    %v675 = vunpack.c.l.b16 %v307
    %v676 = vunpack.c.h.b16 %v307
    %v677 = vunpack.c.l.b16 %v308
    %v678 = vunpack.c.h.b16 %v308
    %v679 = vunpack.c.l.b16 %v309
    %v680 = vunpack.c.h.b16 %v309
    %v681 = vunpack.c.l.b16 %v310
    %v682 = vunpack.c.h.b16 %v310
    %v683 = vunpack.c.l.b16 %v311
    %v684 = vunpack.c.h.b16 %v311
    %v685 = vunpack.c.l.b16 %v312
    %v686 = vunpack.c.h.b16 %v312
    %v687 = vunpack.c.l.b16 %v313
    %v688 = vunpack.c.h.b16 %v313
    %v689 = vunpack.c.l.b16 %v314
    %v690 = vunpack.c.h.b16 %v314
    %v691 = vunpack.c.l.b16 %v315
    %v692 = vunpack.c.h.b16 %v315
    %v693 = vunpack.c.l.b16 %v316
    %v694 = vunpack.c.h.b16 %v316
    %v695 = vunpack.c.l.b16 %v317
    %v696 = vunpack.c.h.b16 %v317
    %v697 = vunpack.c.l.b16 %v318
    %v698 = vunpack.c.h.b16 %v318
    %v699 = vunpack.c.l.b16 %v319
    %v700 = vunpack.c.h.b16 %v319
    %v701 = vunpack.c.l.b16 %v320
    %v702 = vunpack.c.h.b16 %v320
    %v703 = vunpack.c.l.b16 %v321
    %v704 = vunpack.c.h.b16 %v321
    %v705 = vunpack.c.l.b16 %v322
    %v706 = vunpack.c.h.b16 %v322
    %v707 = vpack.c.b16 %v453, %v451
    %v708 = vpack.c.b16 %v454, %v452
    %v709 = vpack.c.b16 %v457, %v455
    %v710 = vpack.c.b16 %v458, %v456
    %v711 = vpack.c.b16 %v461, %v459
    %v712 = vpack.c.b16 %v462, %v460
    %v713 = vpack.c.b16 %v465, %v463
    %v714 = vpack.c.b16 %v466, %v464
    %v715 = vpack.c.b16 %v469, %v467
    %v716 = vpack.c.b16 %v470, %v468
    %v717 = vpack.c.b16 %v473, %v471
    %v718 = vpack.c.b16 %v474, %v472
    %v719 = vpack.c.b16 %v477, %v475
    %v720 = vpack.c.b16 %v478, %v476
    %v721 = vpack.c.b16 %v481, %v479
    %v722 = vpack.c.b16 %v482, %v480
    %v723 = vpack.c.b16 %v485, %v483
    %v724 = vpack.c.b16 %v486, %v484
    %v725 = vpack.c.b16 %v489, %v487
    %v726 = vpack.c.b16 %v490, %v488
    %v727 = vpack.c.b16 %v493, %v491
    %v728 = vpack.c.b16 %v494, %v492
    %v729 = vpack.c.b16 %v497, %v495
    %v730 = vpack.c.b16 %v498, %v496
    %v731 = vpack.c.b16 %v501, %v499
    %v732 = vpack.c.b16 %v502, %v500
    %v733 = vpack.c.b16 %v505, %v503
    %v734 = vpack.c.b16 %v506, %v504
    %v735 = vpack.c.b16 %v509, %v507
    %v736 = vpack.c.b16 %v510, %v508
    %v737 = vpack.c.b16 %v513, %v511
    %v738 = vpack.c.b16 %v514, %v512
    %v739 = vpack.c.b16 %v517, %v515
    %v740 = vpack.c.b16 %v518, %v516
    %v741 = vpack.c.b16 %v521, %v519
    %v742 = vpack.c.b16 %v522, %v520
    %v743 = vpack.c.b16 %v525, %v523
    %v744 = vpack.c.b16 %v526, %v524
    %v745 = vpack.c.b16 %v529, %v527
    %v746 = vpack.c.b16 %v530, %v528
    %v747 = vpack.c.b16 %v533, %v531
    %v748 = vpack.c.b16 %v534, %v532
    %v749 = vpack.c.b16 %v537, %v535
    %v750 = vpack.c.b16 %v538, %v536
    %v751 = vpack.c.b16 %v541, %v539
    %v752 = vpack.c.b16 %v542, %v540
    %v753 = vpack.c.b16 %v545, %v543
    %v754 = vpack.c.b16 %v546, %v544
    %v755 = vpack.c.b16 %v549, %v547
    %v756 = vpack.c.b16 %v550, %v548
    %v757 = vpack.c.b16 %v553, %v551
    %v758 = vpack.c.b16 %v554, %v552
    %v759 = vpack.c.b16 %v557, %v555
    %v760 = vpack.c.b16 %v558, %v556
    %v761 = vpack.c.b16 %v561, %v559
    %v762 = vpack.c.b16 %v562, %v560
    %v763 = vpack.c.b16 %v565, %v563
    %v764 = vpack.c.b16 %v566, %v564
    %v765 = vpack.c.b16 %v569, %v567
    %v766 = vpack.c.b16 %v570, %v568
    %v767 = vpack.c.b16 %v573, %v571
    %v768 = vpack.c.b16 %v574, %v572
    %v769 = vpack.c.b16 %v577, %v575
    %v770 = vpack.c.b16 %v578, %v576
    %v771 = vpack.c.b16 %v581, %v579
    %v772 = vpack.c.b16 %v582, %v580
    %v773 = vpack.c.b16 %v585, %v583
    %v774 = vpack.c.b16 %v586, %v584
    %v775 = vpack.c.b16 %v589, %v587
    %v776 = vpack.c.b16 %v590, %v588
    %v777 = vpack.c.b16 %v593, %v591
    %v778 = vpack.c.b16 %v594, %v592
    %v779 = vpack.c.b16 %v597, %v595
    %v780 = vpack.c.b16 %v598, %v596
    %v781 = vpack.c.b16 %v601, %v599
    %v782 = vpack.c.b16 %v602, %v600
    %v783 = vpack.c.b16 %v605, %v603
    %v784 = vpack.c.b16 %v606, %v604
    %v785 = vpack.c.b16 %v609, %v607
    %v786 = vpack.c.b16 %v610, %v608
    %v787 = vpack.c.b16 %v613, %v611
    %v788 = vpack.c.b16 %v614, %v612
    %v789 = vpack.c.b16 %v617, %v615
    %v790 = vpack.c.b16 %v618, %v616
    %v791 = vpack.c.b16 %v621, %v619
    %v792 = vpack.c.b16 %v622, %v620
    %v793 = vpack.c.b16 %v625, %v623
    %v794 = vpack.c.b16 %v626, %v624
    %v795 = vpack.c.b16 %v629, %v627
    %v796 = vpack.c.b16 %v630, %v628
    %v797 = vpack.c.b16 %v633, %v631
    %v798 = vpack.c.b16 %v634, %v632
    %v799 = vpack.c.b16 %v637, %v635
    %v800 = vpack.c.b16 %v638, %v636
    %v801 = vpack.c.b16 %v641, %v639
    %v802 = vpack.c.b16 %v642, %v640
    %v803 = vpack.c.b16 %v645, %v643
    %v804 = vpack.c.b16 %v646, %v644
    %v805 = vpack.c.b16 %v649, %v647
    %v806 = vpack.c.b16 %v650, %v648
    %v807 = vpack.c.b16 %v653, %v651
    %v808 = vpack.c.b16 %v654, %v652
    %v809 = vpack.c.b16 %v657, %v655
    %v810 = vpack.c.b16 %v658, %v656
    %v811 = vpack.c.b16 %v661, %v659
    %v812 = vpack.c.b16 %v662, %v660
    %v813 = vpack.c.b16 %v665, %v663
    %v814 = vpack.c.b16 %v666, %v664
    %v815 = vpack.c.b16 %v669, %v667
    %v816 = vpack.c.b16 %v670, %v668
    %v817 = vpack.c.b16 %v673, %v671
    %v818 = vpack.c.b16 %v674, %v672
    %v819 = vpack.c.b16 %v677, %v675
    %v820 = vpack.c.b16 %v678, %v676
    %v821 = vpack.c.b16 %v681, %v679
    %v822 = vpack.c.b16 %v682, %v680
    %v823 = vpack.c.b16 %v685, %v683
    %v824 = vpack.c.b16 %v686, %v684
    %v825 = vpack.c.b16 %v689, %v687
    %v826 = vpack.c.b16 %v690, %v688
    %v827 = vpack.c.b16 %v693, %v691
    %v828 = vpack.c.b16 %v694, %v692
    %v829 = vpack.c.b16 %v697, %v695
    %v830 = vpack.c.b16 %v698, %v696
    %v831 = vpack.c.b16 %v701, %v699
    %v832 = vpack.c.b16 %v702, %v700
    %v833 = vpack.c.b16 %v705, %v703
    %v834 = vpack.c.b16 %v706, %v704
    %963 = vmatprep.subr.bf16.mxu0 %v722
    %964 = vmatpush1.bf16.msra.mxu0 %v721
    %965 = vmatprep.subr.bf16.mxu0 %v720
    %966 = vmatpush1.bf16.msra.mxu0 %v719
    %967 = vmatprep.subr.bf16.mxu0 %v718
    %968 = vmatpush1.bf16.msra.mxu0 %v717
    %969 = vmatprep.subr.bf16.mxu0 %v716
    %970 = vmatpush1.bf16.msra.mxu0 %v715
    %971 = vmatprep.subr.bf16.mxu0 %v714
    %972 = vmatpush1.bf16.msra.mxu0 %v713
    %973 = vmatprep.subr.bf16.mxu0 %v712
    %974 = vmatpush1.bf16.msra.mxu0 %v711
    %975 = vmatprep.subr.bf16.mxu0 %v710
    %976 = vmatpush1.bf16.msra.mxu0 %v709
    %977 = vmatprep.subr.bf16.mxu0 %v708
    %978 = vmatpush1.bf16.msra.mxu0 %v707
    %979 = vmatprep.subr.bf16.mxu0 %v738
    %980 = vmatpush2.bf16.msra.mxu0 %v737
    %981 = vmatprep.subr.bf16.mxu0 %v736
    %982 = vmatpush2.bf16.msra.mxu0 %v735
    %983 = vmatprep.subr.bf16.mxu0 %v734
    %984 = vmatpush2.bf16.msra.mxu0 %v733
    %985 = vmatprep.subr.bf16.mxu0 %v732
    %986 = vmatpush2.bf16.msra.mxu0 %v731
    %987 = vmatprep.subr.bf16.mxu0 %v730
    %988 = vmatpush2.bf16.msra.mxu0 %v729
    %989 = vmatprep.subr.bf16.mxu0 %v728
    %990 = vmatpush2.bf16.msra.mxu0 %v727
    %991 = vmatprep.subr.bf16.mxu0 %v726
    %992 = vmatpush2.bf16.msra.mxu0 %v725
    %993 = vmatprep.subr.bf16.mxu0 %v724
    %994 = vmatpush2.bf16.msra.mxu0 %v723
    %995 = vmatprep.mubr.bf16.mxu0 %v188
    %996 = vmatmul.mubr.bf16.gmra.mxu0 %v187
    %v997 = vpop.f32.mrf.mxu0
    %v998 = vadd.f32 0.0, %v997
    %v999 = vpop.f32.mrf.mxu0
    %v1000 = vadd.f32 0.0, %v999
    %v1001 = vpop.f32.mrf.mxu0
    %v1002 = vpop.f32.mrf.mxu0
    %1003 = vdwg.mxu0
    %1004 = vmatprep.subr.bf16.mxu0 %v754
    %1005 = vmatpush1.bf16.msra.mxu0 %v753
    %1006 = vmatprep.subr.bf16.mxu0 %v752
    %1007 = vmatpush1.bf16.msra.mxu0 %v751
    %1008 = vmatprep.subr.bf16.mxu0 %v750
    %1009 = vmatpush1.bf16.msra.mxu0 %v749
    %1010 = vmatprep.subr.bf16.mxu0 %v748
    %1011 = vmatpush1.bf16.msra.mxu0 %v747
    %1012 = vmatprep.subr.bf16.mxu0 %v746
    %1013 = vmatpush1.bf16.msra.mxu0 %v745
    %1014 = vmatprep.subr.bf16.mxu0 %v744
    %1015 = vmatpush1.bf16.msra.mxu0 %v743
    %1016 = vmatprep.subr.bf16.mxu0 %v742
    %1017 = vmatpush1.bf16.msra.mxu0 %v741
    %1018 = vmatprep.subr.bf16.mxu0 %v740
    %1019 = vmatpush1.bf16.msra.mxu0 %v739
    %1020 = vmatprep.subr.bf16.mxu0 %v770
    %1021 = vmatpush2.bf16.msra.mxu0 %v769
    %1022 = vmatprep.subr.bf16.mxu0 %v768
    %1023 = vmatpush2.bf16.msra.mxu0 %v767
    %1024 = vmatprep.subr.bf16.mxu0 %v766
    %1025 = vmatpush2.bf16.msra.mxu0 %v765
    %1026 = vmatprep.subr.bf16.mxu0 %v764
    %1027 = vmatpush2.bf16.msra.mxu0 %v763
    %1028 = vmatprep.subr.bf16.mxu0 %v762
    %1029 = vmatpush2.bf16.msra.mxu0 %v761
    %1030 = vmatprep.subr.bf16.mxu0 %v760
    %1031 = vmatpush2.bf16.msra.mxu0 %v759
    %1032 = vmatprep.subr.bf16.mxu0 %v758
    %1033 = vmatpush2.bf16.msra.mxu0 %v757
    %1034 = vmatprep.subr.bf16.mxu0 %v756
    %1035 = vmatpush2.bf16.msra.mxu0 %v755
    %1036 = vmatprep.mubr.bf16.mxu0 %v190
    %1037 = vmatmul.mubr.bf16.gmra.mxu0 %v189
    %v1038 = vpop.f32.mrf.mxu0
    %v1039 = vadd.f32 %v998, %v1038
    %v1040 = vpop.f32.mrf.mxu0
    %v1041 = vadd.f32 %v1000, %v1040
    %v1042 = vpop.f32.mrf.mxu0
    %v1043 = vpop.f32.mrf.mxu0
    %1044 = vdwg.mxu0
    %1045 = vmatprep.subr.bf16.mxu0 %v786
    %1046 = vmatpush1.bf16.msra.mxu0 %v785
    %1047 = vmatprep.subr.bf16.mxu0 %v784
    %1048 = vmatpush1.bf16.msra.mxu0 %v783
    %1049 = vmatprep.subr.bf16.mxu0 %v782
    %1050 = vmatpush1.bf16.msra.mxu0 %v781
    %1051 = vmatprep.subr.bf16.mxu0 %v780
    %1052 = vmatpush1.bf16.msra.mxu0 %v779
    %1053 = vmatprep.subr.bf16.mxu0 %v778
    %1054 = vmatpush1.bf16.msra.mxu0 %v777
    %1055 = vmatprep.subr.bf16.mxu0 %v776
    %1056 = vmatpush1.bf16.msra.mxu0 %v775
    %1057 = vmatprep.subr.bf16.mxu0 %v774
    %1058 = vmatpush1.bf16.msra.mxu0 %v773
    %1059 = vmatprep.subr.bf16.mxu0 %v772
    %1060 = vmatpush1.bf16.msra.mxu0 %v771
    %1061 = vmatprep.subr.bf16.mxu0 %v802
    %1062 = vmatpush2.bf16.msra.mxu0 %v801
    %1063 = vmatprep.subr.bf16.mxu0 %v800
    %1064 = vmatpush2.bf16.msra.mxu0 %v799
    %1065 = vmatprep.subr.bf16.mxu0 %v798
    %1066 = vmatpush2.bf16.msra.mxu0 %v797
    %1067 = vmatprep.subr.bf16.mxu0 %v796
    %1068 = vmatpush2.bf16.msra.mxu0 %v795
    %1069 = vmatprep.subr.bf16.mxu0 %v794
    %1070 = vmatpush2.bf16.msra.mxu0 %v793
    %1071 = vmatprep.subr.bf16.mxu0 %v792
    %1072 = vmatpush2.bf16.msra.mxu0 %v791
    %1073 = vmatprep.subr.bf16.mxu0 %v790
    %1074 = vmatpush2.bf16.msra.mxu0 %v789
    %1075 = vmatprep.subr.bf16.mxu0 %v788
    %1076 = vmatpush2.bf16.msra.mxu0 %v787
    %1077 = vmatprep.mubr.bf16.mxu0 %v192
    %1078 = vmatmul.mubr.bf16.gmra.mxu0 %v191
    %v1079 = vpop.f32.mrf.mxu0
    %v1080 = vadd.f32 %v1039, %v1079
    %v1081 = vpop.f32.mrf.mxu0
    %v1082 = vadd.f32 %v1041, %v1081
    %v1083 = vpop.f32.mrf.mxu0
    %v1084 = vpop.f32.mrf.mxu0
    %1085 = vdwg.mxu0
    %1086 = vmatprep.subr.bf16.mxu0 %v818
    %1087 = vmatpush1.bf16.msra.mxu0 %v817
    %1088 = vmatprep.subr.bf16.mxu0 %v816
    %1089 = vmatpush1.bf16.msra.mxu0 %v815
    %1090 = vmatprep.subr.bf16.mxu0 %v814
    %1091 = vmatpush1.bf16.msra.mxu0 %v813
    %1092 = vmatprep.subr.bf16.mxu0 %v812
    %1093 = vmatpush1.bf16.msra.mxu0 %v811
    %1094 = vmatprep.subr.bf16.mxu0 %v810
    %1095 = vmatpush1.bf16.msra.mxu0 %v809
    %1096 = vmatprep.subr.bf16.mxu0 %v808
    %1097 = vmatpush1.bf16.msra.mxu0 %v807
    %1098 = vmatprep.subr.bf16.mxu0 %v806
    %1099 = vmatpush1.bf16.msra.mxu0 %v805
    %1100 = vmatprep.subr.bf16.mxu0 %v804
    %1101 = vmatpush1.bf16.msra.mxu0 %v803
    %1102 = vmatprep.subr.bf16.mxu0 %v834
    %1103 = vmatpush2.bf16.msra.mxu0 %v833
    %1104 = vmatprep.subr.bf16.mxu0 %v832
    %1105 = vmatpush2.bf16.msra.mxu0 %v831
    %1106 = vmatprep.subr.bf16.mxu0 %v830
    %1107 = vmatpush2.bf16.msra.mxu0 %v829
    %1108 = vmatprep.subr.bf16.mxu0 %v828
    %1109 = vmatpush2.bf16.msra.mxu0 %v827
    %1110 = vmatprep.subr.bf16.mxu0 %v826
    %1111 = vmatpush2.bf16.msra.mxu0 %v825
    %1112 = vmatprep.subr.bf16.mxu0 %v824
    %1113 = vmatpush2.bf16.msra.mxu0 %v823
    %1114 = vmatprep.subr.bf16.mxu0 %v822
    %1115 = vmatpush2.bf16.msra.mxu0 %v821
    %1116 = vmatprep.subr.bf16.mxu0 %v820
    %1117 = vmatpush2.bf16.msra.mxu0 %v819
    %1118 = vmatprep.mubr.bf16.mxu0 %v194
    %1119 = vmatmul.mubr.bf16.gmra.mxu0 %v193
    %v1120 = vpop.f32.mrf.mxu0
    %v1121 = vadd.f32 %v1080, %v1120
    %v1122 = vpop.f32.mrf.mxu0
    %v1123 = vadd.f32 %v1082, %v1122
    %v1124 = vpop.f32.mrf.mxu0
    %v1125 = vpop.f32.mrf.mxu0
    %1126 = vdwg.mxu0
    %v1127 = vadd.f32 %v89, %v1121
    %v1128 = vadd.f32 %v90, %v1123
    %1129 = vst [vmem:[#allocation2] sm:$0xff] %v1127
    %1130 = vst [vmem:[#allocation2 + $0x8] sm:$0xff] %v1128
    // Predicated region
    $region50: #{tpu_custom_call.1} parent=1 // pred_check
      %p1131 = pneg %p83
    $region51: #{tpu_custom_call.1} parent=1 // pred_check_branch
      %1133 = sbr.rel (%p1131) target = $region53
    $region52: #{tpu_custom_call.1} parent=1 // pred_region
      %v1134 = vld [vmem:[#allocation2] sm:$0xff]
      %v1135 = vld [vmem:[#allocation2 + $0x8] sm:$0xff]
      %v1136 = vld [vmem:[%s2] sm:$0x3]
      %v1138 = vlaneseq
      %v1139 = vshrl.u32 %v1138, 7
      %v1140 = vsub.s32 0, %v1139
      %v1141 = vrot.slane %v1136, %v1140
      %v1142 = vlaneseq
      %v1143 = vshrl.u32 %v1142, 7
      %v1144 = vsub.s32 1, %v1143
      %v1145 = vrot.slane %v1136, %v1144
      %v1148 = vadd.f32 %v1134, %v1141
      %v1149 = vadd.f32 %v1135, %v1145
      %v1150 = vmax.f32 %v1148, 0.0
      %v1151 = vmax.f32 %v1149, 0.0
      %v1152 = vpack.c.bf16 %v1150, %v1150
      %v1153 = vpack.c.bf16 %v1151, %v1151
      %v1154 = vld [vmem:[#allocation8] sm:$0xf]
      %v1155 = vld [vmem:[#allocation8 + $0x4] sm:$0xf]
      %v1156 = vld [vmem:[#allocation8 + $0x8] sm:$0xf]
      %v1157 = vld [vmem:[#allocation8 + $0xc] sm:$0xf]
      %v1158 = vld [vmem:[#allocation8 + $0x10] sm:$0xf]
      %v1159 = vld [vmem:[#allocation8 + $0x14] sm:$0xf]
      %v1160 = vld [vmem:[#allocation8 + $0x18] sm:$0xf]
      %v1161 = vld [vmem:[#allocation8 + $0x1c] sm:$0xf]
      %v1162 = vld [vmem:[#allocation8 + $0x20] sm:$0xf]
      %v1163 = vld [vmem:[#allocation8 + $0x24] sm:$0xf]
      %v1164 = vld [vmem:[#allocation8 + $0x28] sm:$0xf]
      %v1165 = vld [vmem:[#allocation8 + $0x2c] sm:$0xf]
      %v1166 = vld [vmem:[#allocation8 + $0x30] sm:$0xf]
      %v1167 = vld [vmem:[#allocation8 + $0x34] sm:$0xf]
      %v1168 = vld [vmem:[#allocation8 + $0x38] sm:$0xf]
      %v1169 = vld [vmem:[#allocation8 + $0x3c] sm:$0xf]
      %v1170 = vld [vmem:[#allocation8 + $0x40] sm:$0xf]
      %v1171 = vld [vmem:[#allocation8 + $0x44] sm:$0xf]
      %v1172 = vld [vmem:[#allocation8 + $0x48] sm:$0xf]
      %v1173 = vld [vmem:[#allocation8 + $0x4c] sm:$0xf]
      %v1174 = vld [vmem:[#allocation8 + $0x50] sm:$0xf]
      %v1175 = vld [vmem:[#allocation8 + $0x54] sm:$0xf]
      %v1176 = vld [vmem:[#allocation8 + $0x58] sm:$0xf]
      %v1177 = vld [vmem:[#allocation8 + $0x5c] sm:$0xf]
      %v1178 = vld [vmem:[#allocation8 + $0x60] sm:$0xf]
      %v1179 = vld [vmem:[#allocation8 + $0x64] sm:$0xf]
      %v1180 = vld [vmem:[#allocation8 + $0x68] sm:$0xf]
      %v1181 = vld [vmem:[#allocation8 + $0x6c] sm:$0xf]
      %v1182 = vld [vmem:[#allocation8 + $0x70] sm:$0xf]
      %v1183 = vld [vmem:[#allocation8 + $0x74] sm:$0xf]
      %v1184 = vld [vmem:[#allocation8 + $0x78] sm:$0xf]
      %v1185 = vld [vmem:[#allocation8 + $0x7c] sm:$0xf]
      %v1186 = vld [vmem:[%s4] sm:$0x1]
      %v1188 = vlaneseq
      %v1189 = vshrl.u32 %v1188, 7
      %v1190 = vsub.s32 0, %v1189
      %v1191 = vrot.slane %v1186, %v1190
      %v1225 = vunpack.c.l.b16 %v1154
      %v1226 = vunpack.c.l.b16 %v1155
      %v1227 = vunpack.c.l.b16 %v1156
      %v1228 = vunpack.c.l.b16 %v1157
      %v1229 = vunpack.c.l.b16 %v1158
      %v1230 = vunpack.c.l.b16 %v1159
      %v1231 = vunpack.c.l.b16 %v1160
      %v1232 = vunpack.c.l.b16 %v1161
      %v1233 = vunpack.c.l.b16 %v1162
      %v1234 = vunpack.c.l.b16 %v1163
      %v1235 = vunpack.c.l.b16 %v1164
      %v1236 = vunpack.c.l.b16 %v1165
      %v1237 = vunpack.c.l.b16 %v1166
      %v1238 = vunpack.c.l.b16 %v1167
      %v1239 = vunpack.c.l.b16 %v1168
      %v1240 = vunpack.c.l.b16 %v1169
      %v1241 = vunpack.c.l.b16 %v1170
      %v1242 = vunpack.c.l.b16 %v1171
      %v1243 = vunpack.c.l.b16 %v1172
      %v1244 = vunpack.c.l.b16 %v1173
      %v1245 = vunpack.c.l.b16 %v1174
      %v1246 = vunpack.c.l.b16 %v1175
      %v1247 = vunpack.c.l.b16 %v1176
      %v1248 = vunpack.c.l.b16 %v1177
      %v1249 = vunpack.c.l.b16 %v1178
      %v1250 = vunpack.c.l.b16 %v1179
      %v1251 = vunpack.c.l.b16 %v1180
      %v1252 = vunpack.c.l.b16 %v1181
      %v1253 = vunpack.c.l.b16 %v1182
      %v1254 = vunpack.c.l.b16 %v1183
      %v1255 = vunpack.c.l.b16 %v1184
      %v1256 = vunpack.c.l.b16 %v1185
      %v1257 = vpack.c.b16 %v1226, %v1225
      %v1258 = vpack.c.b16 %v1228, %v1227
      %v1259 = vpack.c.b16 %v1230, %v1229
      %v1260 = vpack.c.b16 %v1232, %v1231
      %v1261 = vpack.c.b16 %v1234, %v1233
      %v1262 = vpack.c.b16 %v1236, %v1235
      %v1263 = vpack.c.b16 %v1238, %v1237
      %v1264 = vpack.c.b16 %v1240, %v1239
      %v1265 = vpack.c.b16 %v1242, %v1241
      %v1266 = vpack.c.b16 %v1244, %v1243
      %v1267 = vpack.c.b16 %v1246, %v1245
      %v1268 = vpack.c.b16 %v1248, %v1247
      %v1269 = vpack.c.b16 %v1250, %v1249
      %v1270 = vpack.c.b16 %v1252, %v1251
      %v1271 = vpack.c.b16 %v1254, %v1253
      %v1272 = vpack.c.b16 %v1256, %v1255
      %1289 = vmatprep.subr.bf16.mxu0 0
      %1290 = vmatpush1.bf16.msra.mxu0 %v1264
      %1291 = vmatprep.subr.bf16.mxu0 0
      %1292 = vmatpush1.bf16.msra.mxu0 %v1263
      %1293 = vmatprep.subr.bf16.mxu0 0
      %1294 = vmatpush1.bf16.msra.mxu0 %v1262
      %1295 = vmatprep.subr.bf16.mxu0 0
      %1296 = vmatpush1.bf16.msra.mxu0 %v1261
      %1297 = vmatprep.subr.bf16.mxu0 0
      %1298 = vmatpush1.bf16.msra.mxu0 %v1260
      %1299 = vmatprep.subr.bf16.mxu0 0
      %1300 = vmatpush1.bf16.msra.mxu0 %v1259
      %1301 = vmatprep.subr.bf16.mxu0 0
      %1302 = vmatpush1.bf16.msra.mxu0 %v1258
      %1303 = vmatprep.subr.bf16.mxu0 0
      %1304 = vmatpush1.bf16.msra.mxu0 %v1257
      %1305 = vmatprep.subr.bf16.mxu0 0
      %1306 = vmatpush2.bf16.msra.mxu0 %v1272
      %1307 = vmatprep.subr.bf16.mxu0 0
      %1308 = vmatpush2.bf16.msra.mxu0 %v1271
      %1309 = vmatprep.subr.bf16.mxu0 0
      %1310 = vmatpush2.bf16.msra.mxu0 %v1270
      %1311 = vmatprep.subr.bf16.mxu0 0
      %1312 = vmatpush2.bf16.msra.mxu0 %v1269
      %1313 = vmatprep.subr.bf16.mxu0 0
      %1314 = vmatpush2.bf16.msra.mxu0 %v1268
      %1315 = vmatprep.subr.bf16.mxu0 0
      %1316 = vmatpush2.bf16.msra.mxu0 %v1267
      %1317 = vmatprep.subr.bf16.mxu0 0
      %1318 = vmatpush2.bf16.msra.mxu0 %v1266
      %1319 = vmatprep.subr.bf16.mxu0 0
      %1320 = vmatpush2.bf16.msra.mxu0 %v1265
      %1321 = vmatprep.mubr.bf16.mxu0 %v1153
      %1322 = vmatmul.mubr.bf16.gmra.mxu0 %v1152
      %v1323 = vpop.f32.mrf.mxu0
      %v1324 = vadd.f32 %v1191, %v1323
      %v1325 = vpop.f32.mrf.mxu0
      %v1326 = vpop.f32.mrf.mxu0
      %v1327 = vpop.f32.mrf.mxu0
      %1328 = vdwg.mxu0
      %v1329 = vmax.f32 %v1324, 0.0
      %v1330 = vpack.c.bf16 %v1329, %v1329
      %v1331 = vld [vmem:[#allocation9] sm:$0xf]
      %v1332 = vld [vmem:[#allocation9 + $0x4] sm:$0xf]
      %v1333 = vld [vmem:[#allocation9 + $0x8] sm:$0xf]
      %v1334 = vld [vmem:[#allocation9 + $0xc] sm:$0xf]
      %v1335 = vld [vmem:[#allocation9 + $0x10] sm:$0xf]
      %v1336 = vld [vmem:[#allocation9 + $0x14] sm:$0xf]
      %v1337 = vld [vmem:[#allocation9 + $0x18] sm:$0xf]
      %v1338 = vld [vmem:[#allocation9 + $0x1c] sm:$0xf]
      %v1339 = vld [vmem:[#allocation9 + $0x20] sm:$0xf]
      %v1340 = vld [vmem:[#allocation9 + $0x24] sm:$0xf]
      %v1341 = vld [vmem:[#allocation9 + $0x28] sm:$0xf]
      %v1342 = vld [vmem:[#allocation9 + $0x2c] sm:$0xf]
      %v1343 = vld [vmem:[#allocation9 + $0x30] sm:$0xf]
      %v1344 = vld [vmem:[#allocation9 + $0x34] sm:$0xf]
      %v1345 = vld [vmem:[#allocation9 + $0x38] sm:$0xf]
      %v1346 = vld [vmem:[#allocation9 + $0x3c] sm:$0xf]
      %v1347 = vld [vmem:[%s6] sm:$0x1]
      %v1349 = vlaneseq
      %v1350 = vshrl.u32 %v1349, 7
      %v1351 = vsub.s32 0, %v1350
      %v1352 = vrot.slane %v1347, %v1351
      %v1370 = vunpack.c.l.b16 %v1331
      %v1371 = vunpack.c.l.b16 %v1332
      %v1372 = vunpack.c.l.b16 %v1333
      %v1373 = vunpack.c.l.b16 %v1334
      %v1374 = vunpack.c.l.b16 %v1335
      %v1375 = vunpack.c.l.b16 %v1336
      %v1376 = vunpack.c.l.b16 %v1337
      %v1377 = vunpack.c.l.b16 %v1338
      %v1378 = vunpack.c.l.b16 %v1339
      %v1379 = vunpack.c.l.b16 %v1340
      %v1380 = vunpack.c.l.b16 %v1341
      %v1381 = vunpack.c.l.b16 %v1342
      %v1382 = vunpack.c.l.b16 %v1343
      %v1383 = vunpack.c.l.b16 %v1344
      %v1384 = vunpack.c.l.b16 %v1345
      %v1385 = vunpack.c.l.b16 %v1346
      %v1386 = vpack.c.b16 %v1371, %v1370
      %v1387 = vpack.c.b16 %v1373, %v1372
      %v1388 = vpack.c.b16 %v1375, %v1374
      %v1389 = vpack.c.b16 %v1377, %v1376
      %v1390 = vpack.c.b16 %v1379, %v1378
      %v1391 = vpack.c.b16 %v1381, %v1380
      %v1392 = vpack.c.b16 %v1383, %v1382
      %v1393 = vpack.c.b16 %v1385, %v1384
      %1402 = vmatprep.subr.bf16.mxu0 0
      %1403 = vmatpush1.bf16.msra.mxu0 %v1393
      %1404 = vmatprep.subr.bf16.mxu0 0
      %1405 = vmatpush1.bf16.msra.mxu0 %v1392
      %1406 = vmatprep.subr.bf16.mxu0 0
      %1407 = vmatpush1.bf16.msra.mxu0 %v1391
      %1408 = vmatprep.subr.bf16.mxu0 0
      %1409 = vmatpush1.bf16.msra.mxu0 %v1390
      %1410 = vmatprep.subr.bf16.mxu0 0
      %1411 = vmatpush1.bf16.msra.mxu0 %v1389
      %1412 = vmatprep.subr.bf16.mxu0 0
      %1413 = vmatpush1.bf16.msra.mxu0 %v1388
      %1414 = vmatprep.subr.bf16.mxu0 0
      %1415 = vmatpush1.bf16.msra.mxu0 %v1387
      %1416 = vmatprep.subr.bf16.mxu0 0
      %1417 = vmatpush1.bf16.msra.mxu0 %v1386
      %1418 = vmatprep.subr.bf16.mxu0 0
      %1419 = vmatpush2.bf16.msra.mxu0 0
      %1420 = vmatprep.subr.bf16.mxu0 0
      %1421 = vmatpush2.bf16.msra.mxu0 0
      %1422 = vmatprep.subr.bf16.mxu0 0
      %1423 = vmatpush2.bf16.msra.mxu0 0
      %1424 = vmatprep.subr.bf16.mxu0 0
      %1425 = vmatpush2.bf16.msra.mxu0 0
      %1426 = vmatprep.subr.bf16.mxu0 0
      %1427 = vmatpush2.bf16.msra.mxu0 0
      %1428 = vmatprep.subr.bf16.mxu0 0
      %1429 = vmatpush2.bf16.msra.mxu0 0
      %1430 = vmatprep.subr.bf16.mxu0 0
      %1431 = vmatpush2.bf16.msra.mxu0 0
      %1432 = vmatprep.subr.bf16.mxu0 0
      %1433 = vmatpush2.bf16.msra.mxu0 0
      %1434 = vmatprep.mubr.bf16.mxu0 0
      %1435 = vmatmul.mubr.bf16.gmra.mxu0 %v1330
      %v1436 = vpop.f32.mrf.mxu0
      %v1437 = vadd.f32 %v1352, %v1436
      %v1438 = vpop.f32.mrf.mxu0
      %v1439 = vpop.f32.mrf.mxu0
      %v1440 = vpop.f32.mrf.mxu0
      %1441 = vdwg.mxu0
      %1442 = vst [vmem:[#allocation11] sm:$0xff] %v1437
    $region53: #{tpu_custom_call.1} parent=1 // pred_fallthru
      _
    // Predicated region
    $region54: #{tpu_custom_call.1} parent=1 // pred_check
      _
    $region55: #{tpu_custom_call.1} parent=1 // pred_check_branch
      %1444 = sbr.rel (0) target = $region57
    $region56: #{tpu_custom_call.1} parent=1 // pred_region
      %s1446 = ssub.s32 128, 128
      %1447 = vsyncadd [#allocation5], %s1446
      %s1449 = sshll.u32 [#allocation11], 4
      %s1450 = int_to_ptr.vmem [resolvable:$true] %s1449
      %1452 = dma.vmem_to_hbm [thread:$0]  %s1450, 128, %s7, [#allocation5]
    $region57: #{tpu_custom_call.1} parent=1 // pred_fallthru
      _
    // Predicated region
    $region58: #{tpu_custom_call.1} parent=1 // pred_check
      _
    $region59: #{tpu_custom_call.1} parent=1 // pred_check_branch
      %1454 = sbr.rel (0) target = $region61
    $region60: #{tpu_custom_call.1} parent=1 // pred_region
      %1455 = dma.done [#allocation5], 128
    $region61: #{tpu_custom_call.1} parent=1 // pred_fallthru
      _
    %1456 = vsyncpa [#allocation4], 1
    %1457 = vsyncpa [#allocation7], 1
    %1458 = vsyncpa [#allocation10], 1
    %1459 = vsyncpa [#allocation5], 1

// kernel: tpu_custom_call.1
$region0: #{tpu_custom_call.1}
  #allocation0 [shape = 'u32[]', space=smem, size = 0x4, offset = 0x4, fixed_abs, tag = 'smem constant byte address 0x4 - core index']
  #allocation1 [shape = 'u32[144,128]{1,0:T(1,128)}', space=vmem, size = 0x12000, scoped, tag = 'internal scratch']
  #allocation2 [shape = 'f32[8,256]{1,0:T(8,128)}', space=vmem, size = 0x2000, scoped, tag = 'scratch operand']
  %s0 = inlined_call_operand.hbm [shape: f32[2,1024], index: 0, kind: input, shape index: {}]
  %s1 = inlined_call_operand.hbm [shape: bf16[1024,256], index: 1, kind: input, shape index: {}]
  %s2 = inlined_call_operand.vmem [shape: f32[1,256], index: 2, kind: input, shape index: {}]
  %s3 = inlined_call_operand.hbm [shape: bf16[256,128], index: 3, kind: input, shape index: {}]
  %s4 = inlined_call_operand.vmem [shape: f32[1,128], index: 4, kind: input, shape index: {}]
  %s5 = inlined_call_operand.hbm [shape: bf16[128,128], index: 5, kind: input, shape index: {}]
  %s6 = inlined_call_operand.vmem [shape: f32[1,128], index: 6, kind: input, shape index: {}]
  %s7 = inlined_call_operand.hbm [shape: f32[8,128], index: 7, kind: output, shape index: {}]
  %s8 = sld [smem:[#allocation0]]
  $region62: #{tpu_custom_call.1} parent=0
    _
  %s10 = ssub.s32 1, %s8
  %s11 = scalar_select 0, %s10, %s8
  $region1: #{tpu_custom_call.1} parent=0
    #allocation3 [shape = 'u8[32768]{0}', space=vmem, size = 0x8000, scoped, tag = 'input window, operand 0, single buffered']
    #allocation4 [shape = 's32[1]{0}', space=sflag, size = 0x4, scoped, tag = 'scoped memory for tpu_custom_call.1']
    #allocation5 [shape = 's32[1]{0}', space=sflag, size = 0x4, scoped, tag = 'scoped memory for tpu_custom_call.1']
    #allocation6 [shape = 'u8[524288]{0}', space=vmem, size = 0x80000, scoped, tag = 'input window, operand 1, single buffered']
    #allocation7 [shape = 's32[1]{0}', space=sflag, size = 0x4, scoped, tag = 'scoped memory for tpu_custom_call.1']
    #allocation8 [shape = 'u8[65536]{0}', space=vmem, size = 0x10000, scoped, tag = 'input window, operand 3, single buffered']
    #allocation9 [shape = 'u8[32768]{0}', space=vmem, size = 0x8000, scoped, tag = 'input window, operand 5, single buffered']
    #allocation10 [shape = 's32[1]{0}', space=sflag, size = 0x4, scoped, tag = 'scoped memory for tpu_custom_call.1']
    #allocation11 [shape = 'u8[4096]{0}', space=vmem, size = 0x1000, scoped, tag = 'output window, operand 0, single buffered']
    %12 = vsyncpa [#allocation4], 0
    %13 = vsyncpa [#allocation7], 0
    %14 = vsyncpa [#allocation10], 0
    %15 = vsyncpa [#allocation5], 0
    // Predicated region
    $region2: #{tpu_custom_call.1} parent=1 // pred_check
      _
    $region3: #{tpu_custom_call.1} parent=1 // pred_check_branch
      %17 = sbr.rel (0) target = $region5
    $region4: #{tpu_custom_call.1} parent=1 // pred_region
      %s19 = ssub.s32 1024, 256
      %20 = vsyncadd [#allocation4], %s19
      %s21 = sshll.u32 [#allocation3], 4
      %s22 = int_to_ptr.vmem [resolvable:$true] %s21
      %27 = dma.hbm_to_vmem [thread:$0]  %s0, 256, %s22, [#allocation4], 256, 256, 16
    $region5: #{tpu_custom_call.1} parent=1 // pred_fallthru
      _
    // Predicated region
    $region6: #{tpu_custom_call.1} parent=1 // pred_check
      _
    $region7: #{tpu_custom_call.1} parent=1 // pred_check_branch
      %29 = sbr.rel (0) target = $region9
    $region8: #{tpu_custom_call.1} parent=1 // pred_region
      %s31 = ssub.s32 16384, 16384
      %32 = vsyncadd [#allocation7], %s31
      %s33 = sshll.u32 [#allocation6], 4
      %s34 = int_to_ptr.vmem [resolvable:$true] %s33
      %39 = dma.hbm_to_vmem [thread:$0]  %s1, 16384, %s34, [#allocation7], 128, 128, 8
    $region9: #{tpu_custom_call.1} parent=1 // pred_fallthru
      _
    // Predicated region
    $region10: #{tpu_custom_call.1} parent=1 // pred_check
      _
    $region11: #{tpu_custom_call.1} parent=1 // pred_check_branch
      %41 = sbr.rel (0) target = $region13
    $region12: #{tpu_custom_call.1} parent=1 // pred_region
      _
    $region13: #{tpu_custom_call.1} parent=1 // pred_fallthru
      _
    // Predicated region
    $region14: #{tpu_custom_call.1} parent=1 // pred_check
      _
    $region15: #{tpu_custom_call.1} parent=1 // pred_check_branch
      %43 = sbr.rel (0) target = $region17
    $region16: #{tpu_custom_call.1} parent=1 // pred_region
      %s45 = ssub.s32 2048, 2048
      %46 = vsyncadd [#allocation7], %s45
      %s47 = sshll.u32 [#allocation8], 4
      %s48 = int_to_ptr.vmem [resolvable:$true] %s47
      %53 = dma.hbm_to_vmem [thread:$0]  %s3, 2048, %s48, [#allocation7], 64, 64, 4
    $region17: #{tpu_custom_call.1} parent=1 // pred_fallthru
      _
    // Predicated region
    $region18: #{tpu_custom_call.1} parent=1 // pred_check
      _
    $region19: #{tpu_custom_call.1} parent=1 // pred_check_branch
      %55 = sbr.rel (0) target = $region21
    $region20: #{tpu_custom_call.1} parent=1 // pred_region
      _
    $region21: #{tpu_custom_call.1} parent=1 // pred_fallthru
      _
    // Predicated region
    $region22: #{tpu_custom_call.1} parent=1 // pred_check
      _
    $region23: #{tpu_custom_call.1} parent=1 // pred_check_branch
      %57 = sbr.rel (0) target = $region25
    $region24: #{tpu_custom_call.1} parent=1 // pred_region
      %s59 = ssub.s32 1024, 1024
      %60 = vsyncadd [#allocation10], %s59
      %s61 = sshll.u32 [#allocation9], 4
      %s62 = int_to_ptr.vmem [resolvable:$true] %s61
      %67 = dma.hbm_to_vmem [thread:$0]  %s5, 1024, %s62, [#allocation10], 64, 64, 4
    $region25: #{tpu_custom_call.1} parent=1 // pred_fallthru
      _
    // Predicated region
    $region26: #{tpu_custom_call.1} parent=1 // pred_check
      _
    $region27: #{tpu_custom_call.1} parent=1 // pred_check_branch
      %69 = sbr.rel (0) target = $region29
    $region28: #{tpu_custom_call.1} parent=1 // pred_region
      _
    $region29: #{tpu_custom_call.1} parent=1 // pred_fallthru
      _
    // Predicated region
    $region30: #{tpu_custom_call.1} parent=1 // pred_check
      _
    $region31: #{tpu_custom_call.1} parent=1 // pred_check_branch
      %71 = sbr.rel (0) target = $region33
    $region32: #{tpu_custom_call.1} parent=1 // pred_region
      %72 = dma.done [#allocation4], 1024
    $region33: #{tpu_custom_call.1} parent=1 // pred_fallthru
      _
    // Predicated region
    $region34: #{tpu_custom_call.1} parent=1 // pred_check
      _
    $region35: #{tpu_custom_call.1} parent=1 // pred_check_branch
      %74 = sbr.rel (0) target = $region37
    $region36: #{tpu_custom_call.1} parent=1 // pred_region
      %75 = dma.done [#allocation7], 16384
    $region37: #{tpu_custom_call.1} parent=1 // pred_fallthru
      _
    // Predicated region
    $region38: #{tpu_custom_call.1} parent=1 // pred_check
      _
    $region39: #{tpu_custom_call.1} parent=1 // pred_check_branch
      %77 = sbr.rel (0) target = $region41
    $region40: #{tpu_custom_call.1} parent=1 // pred_region
      %78 = dma.done [#allocation7], 2048
    $region41: #{tpu_custom_call.1} parent=1 // pred_fallthru
      _
    // Predicated region
    $region42: #{tpu_custom_call.1} parent=1 // pred_check
      _
    $region43: #{tpu_custom_call.1} parent=1 // pred_check_branch
      %80 = sbr.rel (0) target = $region45
    $region44: #{tpu_custom_call.1} parent=1 // pred_region
      %81 = dma.done [#allocation10], 1024
    $region45: #{tpu_custom_call.1} parent=1 // pred_fallthru
      _
    %p83 = scmp.eq.s32.totalorder 0, 0
    // Predicated region
    $region46: #{tpu_custom_call.1} parent=1 // pred_check
      %p84 = pneg %p83
    $region47: #{tpu_custom_call.1} parent=1 // pred_check_branch
      %86 = sbr.rel (%p84) target = $region49
    $region48: #{tpu_custom_call.1} parent=1 // pred_region
      %87 = vst [vmem:[#allocation2] sm:$0xff] 0.0
      %88 = vst [vmem:[#allocation2 + $0x8] sm:$0xff] 0.0
    $region49: #{tpu_custom_call.1} parent=1 // pred_fallthru
      _
    %v89 = vld [vmem:[#allocation2] sm:$0xff]
    %v90 = vld [vmem:[#allocation2 + $0x8] sm:$0xff]
    %v91 = vld [vmem:[#allocation3] sm:$0xff]
    %v92 = vld [vmem:[#allocation3 + $0x8] sm:$0xff]
    %v93 = vld [vmem:[#allocation3 + $0x10] sm:$0xff]
    %v94 = vld [vmem:[#allocation3 + $0x18] sm:$0xff]
    %v95 = vld [vmem:[#allocation3 + $0x20] sm:$0xff]
    %v96 = vld [vmem:[#allocation3 + $0x28] sm:$0xff]
    %v97 = vld [vmem:[#allocation3 + $0x30] sm:$0xff]
    %v98 = vld [vmem:[#allocation3 + $0x38] sm:$0xff]
    %v107 = vcombine.low %v91, %v93
    %v108 = vcombine.high %v91, %v93
    %v109 = vcombine.low %v95, %v97
    %v110 = vcombine.high %v95, %v97
    %v112 = vunpack.c.l.s4 1983009808
    %v113 = vunpack.c.0.s8 %v112
    %v114 = vlaneseq
    %v115 = vshrl.u32 %v114, 7
    %v116 = vsub.s32 %v113, %v115
    %v117 = vrot.slane %v107, %v116
    %v119 = vunpack.c.l.s4 1983009808
    %v120 = vunpack.c.0.s8 %v119
    %v121 = vlaneseq
    %v122 = vshrl.u32 %v121, 7
    %v123 = vsub.s32 %v120, %v122
    %v124 = vrot.slane %v108, %v123
    %v126 = vunpack.c.l.s4 1983009808
    %v127 = vunpack.c.0.s8 %v126
    %v128 = vlaneseq
    %v129 = vshrl.u32 %v128, 7
    %v130 = vsub.s32 %v127, %v129
    %v131 = vrot.slane %v109, %v130
    %v133 = vunpack.c.l.s4 1983009808
    %v134 = vunpack.c.0.s8 %v133
    %v135 = vlaneseq
    %v136 = vshrl.u32 %v135, 7
    %v137 = vsub.s32 %v134, %v136
    %v138 = vrot.slane %v110, %v137
    %v139 = vcombine.low %v117, %v131
    %v140 = vcombine.high %v117, %v131
    %v141 = vcombine.low %v124, %v138
    %v142 = vcombine.high %v124, %v138
    %v143 = vcombine.low %v92, %v94
    %v144 = vcombine.high %v92, %v94
    %v145 = vcombine.low %v96, %v98
    %v146 = vcombine.high %v96, %v98
    %v148 = vunpack.c.l.s4 1983009808
    %v149 = vunpack.c.0.s8 %v148
    %v150 = vlaneseq
    %v151 = vshrl.u32 %v150, 7
    %v152 = vsub.s32 %v149, %v151
    %v153 = vrot.slane %v143, %v152
    %v155 = vunpack.c.l.s4 1983009808
    %v156 = vunpack.c.0.s8 %v155
    %v157 = vlaneseq
    %v158 = vshrl.u32 %v157, 7
    %v159 = vsub.s32 %v156, %v158
    %v160 = vrot.slane %v144, %v159
    %v162 = vunpack.c.l.s4 1983009808
    %v163 = vunpack.c.0.s8 %v162
    %v164 = vlaneseq
    %v165 = vshrl.u32 %v164, 7
    %v166 = vsub.s32 %v163, %v165
    %v167 = vrot.slane %v145, %v166
    %v169 = vunpack.c.l.s4 1983009808
    %v170 = vunpack.c.0.s8 %v169
    %v171 = vlaneseq
    %v172 = vshrl.u32 %v171, 7
    %v173 = vsub.s32 %v170, %v172
    %v174 = vrot.slane %v146, %v173
    %v175 = vcombine.low %v153, %v167
    %v176 = vcombine.high %v153, %v167
    %v177 = vcombine.low %v160, %v174
    %v178 = vcombine.high %v160, %v174
    %v187 = vpack.c.bf16 %v139, %v139
    %v188 = vpack.c.bf16 %v140, %v140
    %v189 = vpack.c.bf16 %v141, %v141
    %v190 = vpack.c.bf16 %v142, %v142
    %v191 = vpack.c.bf16 %v175, %v175
    %v192 = vpack.c.bf16 %v176, %v176
    %v193 = vpack.c.bf16 %v177, %v177
    %v194 = vpack.c.bf16 %v178, %v178
    %v195 = vld [vmem:[#allocation6] sm:$0xff]
    %v196 = vld [vmem:[#allocation6 + $0x8] sm:$0xff]
    %v197 = vld [vmem:[#allocation6 + $0x10] sm:$0xff]
    %v198 = vld [vmem:[#allocation6 + $0x18] sm:$0xff]
    %v199 = vld [vmem:[#allocation6 + $0x20] sm:$0xff]
    %v200 = vld [vmem:[#allocation6 + $0x28] sm:$0xff]
    %v201 = vld [vmem:[#allocation6 + $0x30] sm:$0xff]
    %v202 = vld [vmem:[#allocation6 + $0x38] sm:$0xff]
    %v203 = vld [vmem:[#allocation6 + $0x40] sm:$0xff]
    %v204 = vld [vmem:[#allocation6 + $0x48] sm:$0xff]
    %v205 = vld [vmem:[#allocation6 + $0x50] sm:$0xff]
    %v206 = vld [vmem:[#allocation6 + $0x58] sm:$0xff]
    %v207 = vld [vmem:[#allocation6 + $0x60] sm:$0xff]
    %v208 = vld [vmem:[#allocation6 + $0x68] sm:$0xff]
    %v209 = vld [vmem:[#allocation6 + $0x70] sm:$0xff]
    %v210 = vld [vmem:[#allocation6 + $0x78] sm:$0xff]
    %v211 = vld [vmem:[#allocation6 + $0x80] sm:$0xff]
    %v212 = vld [vmem:[#allocation6 + $0x88] sm:$0xff]
    %v213 = vld [vmem:[#allocation6 + $0x90] sm:$0xff]
    %v214 = vld [vmem:[#allocation6 + $0x98] sm:$0xff]
    %v215 = vld [vmem:[#allocation6 + $0xa0] sm:$0xff]
    %v216 = vld [vmem:[#allocation6 + $0xa8] sm:$0xff]
    %v217 = vld [vmem:[#allocation6 + $0xb0] sm:$0xff]
    %v218 = vld [vmem:[#allocation6 + $0xb8] sm:$0xff]
    %v219 = vld [vmem:[#allocation6 + $0xc0] sm:$0xff]
    %v220 = vld [vmem:[#allocation6 + $0xc8] sm:$0xff]
    %v221 = vld [vmem:[#allocation6 + $0xd0] sm:$0xff]
    %v222 = vld [vmem:[#allocation6 + $0xd8] sm:$0xff]
    %v223 = vld [vmem:[#allocation6 + $0xe0] sm:$0xff]
    %v224 = vld [vmem:[#allocation6 + $0xe8] sm:$0xff]
    %v225 = vld [vmem:[#allocation6 + $0xf0] sm:$0xff]
    %v226 = vld [vmem:[#allocation6 + $0xf8] sm:$0xff]
    %v227 = vld [vmem:[#allocation6 + $0x100] sm:$0xff]
    %v228 = vld [vmem:[#allocation6 + $0x108] sm:$0xff]
    %v229 = vld [vmem:[#allocation6 + $0x110] sm:$0xff]
    %v230 = vld [vmem:[#allocation6 + $0x118] sm:$0xff]
    %v231 = vld [vmem:[#allocation6 + $0x120] sm:$0xff]
    %v232 = vld [vmem:[#allocation6 + $0x128] sm:$0xff]
    %v233 = vld [vmem:[#allocation6 + $0x130] sm:$0xff]
    %v234 = vld [vmem:[#allocation6 + $0x138] sm:$0xff]
    %v235 = vld [vmem:[#allocation6 + $0x140] sm:$0xff]
    %v236 = vld [vmem:[#allocation6 + $0x148] sm:$0xff]
    %v237 = vld [vmem:[#allocation6 + $0x150] sm:$0xff]
    %v238 = vld [vmem:[#allocation6 + $0x158] sm:$0xff]
    %v239 = vld [vmem:[#allocation6 + $0x160] sm:$0xff]
    %v240 = vld [vmem:[#allocation6 + $0x168] sm:$0xff]
    %v241 = vld [vmem:[#allocation6 + $0x170] sm:$0xff]
    %v242 = vld [vmem:[#allocation6 + $0x178] sm:$0xff]
    %v243 = vld [vmem:[#allocation6 + $0x180] sm:$0xff]
    %v244 = vld [vmem:[#allocation6 + $0x188] sm:$0xff]
    %v245 = vld [vmem:[#allocation6 + $0x190] sm:$0xff]
    %v246 = vld [vmem:[#allocation6 + $0x198] sm:$0xff]
    %v247 = vld [vmem:[#allocation6 + $0x1a0] sm:$0xff]
    %v248 = vld [vmem:[#allocation6 + $0x1a8] sm:$0xff]
    %v249 = vld [vmem:[#allocation6 + $0x1b0] sm:$0xff]
    %v250 = vld [vmem:[#allocation6 + $0x1b8] sm:$0xff]
    %v251 = vld [vmem:[#allocation6 + $0x1c0] sm:$0xff]
    %v252 = vld [vmem:[#allocation6 + $0x1c8] sm:$0xff]
    %v253 = vld [vmem:[#allocation6 + $0x1d0] sm:$0xff]
    %v254 = vld [vmem:[#allocation6 + $0x1d8] sm:$0xff]
    %v255 = vld [vmem:[#allocation6 + $0x1e0] sm:$0xff]
    %v256 = vld [vmem:[#allocation6 + $0x1e8] sm:$0xff]
    %v257 = vld [vmem:[#allocation6 + $0x1f0] sm:$0xff]
    %v258 = vld [vmem:[#allocation6 + $0x1f8] sm:$0xff]
    %v259 = vld [vmem:[#allocation6 + $0x200] sm:$0xff]
    %v260 = vld [vmem:[#allocation6 + $0x208] sm:$0xff]
    %v261 = vld [vmem:[#allocation6 + $0x210] sm:$0xff]
    %v262 = vld [vmem:[#allocation6 + $0x218] sm:$0xff]
    %v263 = vld [vmem:[#allocation6 + $0x220] sm:$0xff]
    %v264 = vld [vmem:[#allocation6 + $0x228] sm:$0xff]
    %v265 = vld [vmem:[#allocation6 + $0x230] sm:$0xff]
    %v266 = vld [vmem:[#allocation6 + $0x238] sm:$0xff]
    %v267 = vld [vmem:[#allocation6 + $0x240] sm:$0xff]
    %v268 = vld [vmem:[#allocation6 + $0x248] sm:$0xff]
    %v269 = vld [vmem:[#allocation6 + $0x250] sm:$0xff]
    %v270 = vld [vmem:[#allocation6 + $0x258] sm:$0xff]
    %v271 = vld [vmem:[#allocation6 + $0x260] sm:$0xff]
    %v272 = vld [vmem:[#allocation6 + $0x268] sm:$0xff]
    %v273 = vld [vmem:[#allocation6 + $0x270] sm:$0xff]
    %v274 = vld [vmem:[#allocation6 + $0x278] sm:$0xff]
    %v275 = vld [vmem:[#allocation6 + $0x280] sm:$0xff]
    %v276 = vld [vmem:[#allocation6 + $0x288] sm:$0xff]
    %v277 = vld [vmem:[#allocation6 + $0x290] sm:$0xff]
    %v278 = vld [vmem:[#allocation6 + $0x298] sm:$0xff]
    %v279 = vld [vmem:[#allocation6 + $0x2a0] sm:$0xff]
    %v280 = vld [vmem:[#allocation6 + $0x2a8] sm:$0xff]
    %v281 = vld [vmem:[#allocation6 + $0x2b0] sm:$0xff]
    %v282 = vld [vmem:[#allocation6 + $0x2b8] sm:$0xff]
    %v283 = vld [vmem:[#allocation6 + $0x2c0] sm:$0xff]
    %v284 = vld [vmem:[#allocation6 + $0x2c8] sm:$0xff]
    %v285 = vld [vmem:[#allocation6 + $0x2d0] sm:$0xff]
    %v286 = vld [vmem:[#allocation6 + $0x2d8] sm:$0xff]
    %v287 = vld [vmem:[#allocation6 + $0x2e0] sm:$0xff]
    %v288 = vld [vmem:[#allocation6 + $0x2e8] sm:$0xff]
    %v289 = vld [vmem:[#allocation6 + $0x2f0] sm:$0xff]
    %v290 = vld [vmem:[#allocation6 + $0x2f8] sm:$0xff]
    %v291 = vld [vmem:[#allocation6 + $0x300] sm:$0xff]
    %v292 = vld [vmem:[#allocation6 + $0x308] sm:$0xff]
    %v293 = vld [vmem:[#allocation6 + $0x310] sm:$0xff]
    %v294 = vld [vmem:[#allocation6 + $0x318] sm:$0xff]
    %v295 = vld [vmem:[#allocation6 + $0x320] sm:$0xff]
    %v296 = vld [vmem:[#allocation6 + $0x328] sm:$0xff]
    %v297 = vld [vmem:[#allocation6 + $0x330] sm:$0xff]
    %v298 = vld [vmem:[#allocation6 + $0x338] sm:$0xff]
    %v299 = vld [vmem:[#allocation6 + $0x340] sm:$0xff]
    %v300 = vld [vmem:[#allocation6 + $0x348] sm:$0xff]
    %v301 = vld [vmem:[#allocation6 + $0x350] sm:$0xff]
    %v302 = vld [vmem:[#allocation6 + $0x358] sm:$0xff]
    %v303 = vld [vmem:[#allocation6 + $0x360] sm:$0xff]
    %v304 = vld [vmem:[#allocation6 + $0x368] sm:$0xff]
    %v305 = vld [vmem:[#allocation6 + $0x370] sm:$0xff]
    %v306 = vld [vmem:[#allocation6 + $0x378] sm:$0xff]
    %v307 = vld [vmem:[#allocation6 + $0x380] sm:$0xff]
    %v308 = vld [vmem:[#allocation6 + $0x388] sm:$0xff]
    %v309 = vld [vmem:[#allocation6 + $0x390] sm:$0xff]
    %v310 = vld [vmem:[#allocation6 + $0x398] sm:$0xff]
    %v311 = vld [vmem:[#allocation6 + $0x3a0] sm:$0xff]
    %v312 = vld [vmem:[#allocation6 + $0x3a8] sm:$0xff]
    %v313 = vld [vmem:[#allocation6 + $0x3b0] sm:$0xff]
    %v314 = vld [vmem:[#allocation6 + $0x3b8] sm:$0xff]
    %v315 = vld [vmem:[#allocation6 + $0x3c0] sm:$0xff]
    %v316 = vld [vmem:[#allocation6 + $0x3c8] sm:$0xff]
    %v317 = vld [vmem:[#allocation6 + $0x3d0] sm:$0xff]
    %v318 = vld [vmem:[#allocation6 + $0x3d8] sm:$0xff]
    %v319 = vld [vmem:[#allocation6 + $0x3e0] sm:$0xff]
    %v320 = vld [vmem:[#allocation6 + $0x3e8] sm:$0xff]
    %v321 = vld [vmem:[#allocation6 + $0x3f0] sm:$0xff]
    %v322 = vld [vmem:[#allocation6 + $0x3f8] sm:$0xff]
    %v451 = vunpack.c.l.b16 %v195
    %v452 = vunpack.c.h.b16 %v195
    %v453 = vunpack.c.l.b16 %v196
    %v454 = vunpack.c.h.b16 %v196
    %v455 = vunpack.c.l.b16 %v197
    %v456 = vunpack.c.h.b16 %v197
    %v457 = vunpack.c.l.b16 %v198
    %v458 = vunpack.c.h.b16 %v198
    %v459 = vunpack.c.l.b16 %v199
    %v460 = vunpack.c.h.b16 %v199
    %v461 = vunpack.c.l.b16 %v200
    %v462 = vunpack.c.h.b16 %v200
    %v463 = vunpack.c.l.b16 %v201
    %v464 = vunpack.c.h.b16 %v201
    %v465 = vunpack.c.l.b16 %v202
    %v466 = vunpack.c.h.b16 %v202
    %v467 = vunpack.c.l.b16 %v203
    %v468 = vunpack.c.h.b16 %v203
    %v469 = vunpack.c.l.b16 %v204
    %v470 = vunpack.c.h.b16 %v204
    %v471 = vunpack.c.l.b16 %v205
    %v472 = vunpack.c.h.b16 %v205
    %v473 = vunpack.c.l.b16 %v206
    %v474 = vunpack.c.h.b16 %v206
    %v475 = vunpack.c.l.b16 %v207
    %v476 = vunpack.c.h.b16 %v207
    %v477 = vunpack.c.l.b16 %v208
    %v478 = vunpack.c.h.b16 %v208
    %v479 = vunpack.c.l.b16 %v209
    %v480 = vunpack.c.h.b16 %v209
    %v481 = vunpack.c.l.b16 %v210
    %v482 = vunpack.c.h.b16 %v210
    %v483 = vunpack.c.l.b16 %v211
    %v484 = vunpack.c.h.b16 %v211
    %v485 = vunpack.c.l.b16 %v212
    %v486 = vunpack.c.h.b16 %v212
    %v487 = vunpack.c.l.b16 %v213
    %v488 = vunpack.c.h.b16 %v213
    %v489 = vunpack.c.l.b16 %v214
    %v490 = vunpack.c.h.b16 %v214
    %v491 = vunpack.c.l.b16 %v215
    %v492 = vunpack.c.h.b16 %v215
    %v493 = vunpack.c.l.b16 %v216
    %v494 = vunpack.c.h.b16 %v216
    %v495 = vunpack.c.l.b16 %v217
    %v496 = vunpack.c.h.b16 %v217
    %v497 = vunpack.c.l.b16 %v218
    %v498 = vunpack.c.h.b16 %v218
    %v499 = vunpack.c.l.b16 %v219
    %v500 = vunpack.c.h.b16 %v219
    %v501 = vunpack.c.l.b16 %v220
    %v502 = vunpack.c.h.b16 %v220
    %v503 = vunpack.c.l.b16 %v221
    %v504 = vunpack.c.h.b16 %v221
    %v505 = vunpack.c.l.b16 %v222
    %v506 = vunpack.c.h.b16 %v222
    %v507 = vunpack.c.l.b16 %v223
    %v508 = vunpack.c.h.b16 %v223
    %v509 = vunpack.c.l.b16 %v224
    %v510 = vunpack.c.h.b16 %v224
    %v511 = vunpack.c.l.b16 %v225
    %v512 = vunpack.c.h.b16 %v225
    %v513 = vunpack.c.l.b16 %v226
    %v514 = vunpack.c.h.b16 %v226
    %v515 = vunpack.c.l.b16 %v227
    %v516 = vunpack.c.h.b16 %v227
    %v517 = vunpack.c.l.b16 %v228
    %v518 = vunpack.c.h.b16 %v228
    %v519 = vunpack.c.l.b16 %v229
    %v520 = vunpack.c.h.b16 %v229
    %v521 = vunpack.c.l.b16 %v230
    %v522 = vunpack.c.h.b16 %v230
    %v523 = vunpack.c.l.b16 %v231
    %v524 = vunpack.c.h.b16 %v231
    %v525 = vunpack.c.l.b16 %v232
    %v526 = vunpack.c.h.b16 %v232
    %v527 = vunpack.c.l.b16 %v233
    %v528 = vunpack.c.h.b16 %v233
    %v529 = vunpack.c.l.b16 %v234
    %v530 = vunpack.c.h.b16 %v234
    %v531 = vunpack.c.l.b16 %v235
    %v532 = vunpack.c.h.b16 %v235
    %v533 = vunpack.c.l.b16 %v236
    %v534 = vunpack.c.h.b16 %v236
    %v535 = vunpack.c.l.b16 %v237
    %v536 = vunpack.c.h.b16 %v237
    %v537 = vunpack.c.l.b16 %v238
    %v538 = vunpack.c.h.b16 %v238
    %v539 = vunpack.c.l.b16 %v239
    %v540 = vunpack.c.h.b16 %v239
    %v541 = vunpack.c.l.b16 %v240
    %v542 = vunpack.c.h.b16 %v240
    %v543 = vunpack.c.l.b16 %v241
    %v544 = vunpack.c.h.b16 %v241
    %v545 = vunpack.c.l.b16 %v242
    %v546 = vunpack.c.h.b16 %v242
    %v547 = vunpack.c.l.b16 %v243
    %v548 = vunpack.c.h.b16 %v243
    %v549 = vunpack.c.l.b16 %v244
    %v550 = vunpack.c.h.b16 %v244
    %v551 = vunpack.c.l.b16 %v245
    %v552 = vunpack.c.h.b16 %v245
    %v553 = vunpack.c.l.b16 %v246
    %v554 = vunpack.c.h.b16 %v246
    %v555 = vunpack.c.l.b16 %v247
    %v556 = vunpack.c.h.b16 %v247
    %v557 = vunpack.c.l.b16 %v248
    %v558 = vunpack.c.h.b16 %v248
    %v559 = vunpack.c.l.b16 %v249
    %v560 = vunpack.c.h.b16 %v249
    %v561 = vunpack.c.l.b16 %v250
    %v562 = vunpack.c.h.b16 %v250
    %v563 = vunpack.c.l.b16 %v251
    %v564 = vunpack.c.h.b16 %v251
    %v565 = vunpack.c.l.b16 %v252
    %v566 = vunpack.c.h.b16 %v252
    %v567 = vunpack.c.l.b16 %v253
    %v568 = vunpack.c.h.b16 %v253
    %v569 = vunpack.c.l.b16 %v254
    %v570 = vunpack.c.h.b16 %v254
    %v571 = vunpack.c.l.b16 %v255
    %v572 = vunpack.c.h.b16 %v255
    %v573 = vunpack.c.l.b16 %v256
    %v574 = vunpack.c.h.b16 %v256
    %v575 = vunpack.c.l.b16 %v257
    %v576 = vunpack.c.h.b16 %v257
    %v577 = vunpack.c.l.b16 %v258
    %v578 = vunpack.c.h.b16 %v258
    %v579 = vunpack.c.l.b16 %v259
    %v580 = vunpack.c.h.b16 %v259
    %v581 = vunpack.c.l.b16 %v260
    %v582 = vunpack.c.h.b16 %v260
    %v583 = vunpack.c.l.b16 %v261
    %v584 = vunpack.c.h.b16 %v261
    %v585 = vunpack.c.l.b16 %v262
    %v586 = vunpack.c.h.b16 %v262
    %v587 = vunpack.c.l.b16 %v263
    %v588 = vunpack.c.h.b16 %v263
    %v589 = vunpack.c.l.b16 %v264
    %v590 = vunpack.c.h.b16 %v264
    %v591 = vunpack.c.l.b16 %v265
    %v592 = vunpack.c.h.b16 %v265
    %v593 = vunpack.c.l.b16 %v266
    %v594 = vunpack.c.h.b16 %v266
    %v595 = vunpack.c.l.b16 %v267
    %v596 = vunpack.c.h.b16 %v267
    %v597 = vunpack.c.l.b16 %v268
    %v598 = vunpack.c.h.b16 %v268
    %v599 = vunpack.c.l.b16 %v269
    %v600 = vunpack.c.h.b16 %v269
    %v601 = vunpack.c.l.b16 %v270
    %v602 = vunpack.c.h.b16 %v270
    %v603 = vunpack.c.l.b16 %v271
    %v604 = vunpack.c.h.b16 %v271
    %v605 = vunpack.c.l.b16 %v272
    %v606 = vunpack.c.h.b16 %v272
    %v607 = vunpack.c.l.b16 %v273
    %v608 = vunpack.c.h.b16 %v273
    %v609 = vunpack.c.l.b16 %v274
    %v610 = vunpack.c.h.b16 %v274
    %v611 = vunpack.c.l.b16 %v275
    %v612 = vunpack.c.h.b16 %v275
    %v613 = vunpack.c.l.b16 %v276
    %v614 = vunpack.c.h.b16 %v276
    %v615 = vunpack.c.l.b16 %v277
    %v616 = vunpack.c.h.b16 %v277
    %v617 = vunpack.c.l.b16 %v278
    %v618 = vunpack.c.h.b16 %v278
    %v619 = vunpack.c.l.b16 %v279
    %v620 = vunpack.c.h.b16 %v279
    %v621 = vunpack.c.l.b16 %v280
    %v622 = vunpack.c.h.b16 %v280
    %v623 = vunpack.c.l.b16 %v281
    %v624 = vunpack.c.h.b16 %v281
    %v625 = vunpack.c.l.b16 %v282
    %v626 = vunpack.c.h.b16 %v282
    %v627 = vunpack.c.l.b16 %v283
    %v628 = vunpack.c.h.b16 %v283
    %v629 = vunpack.c.l.b16 %v284
    %v630 = vunpack.c.h.b16 %v284
    %v631 = vunpack.c.l.b16 %v285
    %v632 = vunpack.c.h.b16 %v285
    %v633 = vunpack.c.l.b16 %v286
    %v634 = vunpack.c.h.b16 %v286
    %v635 = vunpack.c.l.b16 %v287
    %v636 = vunpack.c.h.b16 %v287
    %v637 = vunpack.c.l.b16 %v288
    %v638 = vunpack.c.h.b16 %v288
    %v639 = vunpack.c.l.b16 %v289
    %v640 = vunpack.c.h.b16 %v289
    %v641 = vunpack.c.l.b16 %v290
    %v642 = vunpack.c.h.b16 %v290
    %v643 = vunpack.c.l.b16 %v291
    %v644 = vunpack.c.h.b16 %v291
    %v645 = vunpack.c.l.b16 %v292
    %v646 = vunpack.c.h.b16 %v292
    %v647 = vunpack.c.l.b16 %v293
    %v648 = vunpack.c.h.b16 %v293
    %v649 = vunpack.c.l.b16 %v294
    %v650 = vunpack.c.h.b16 %v294
    %v651 = vunpack.c.l.b16 %v295
    %v652 = vunpack.c.h.b16 %v295
    %v653 = vunpack.c.l.b16 %v296
    %v654 = vunpack.c.h.b16 %v296
    %v655 = vunpack.c.l.b16 %v297
    %v656 = vunpack.c.h.b16 %v297
    %v657 = vunpack.c.l.b16 %v298
    %v658 = vunpack.c.h.b16 %v298
    %v659 = vunpack.c.l.b16 %v299
    %v660 = vunpack.c.h.b16 %v299
    %v661 = vunpack.c.l.b16 %v300
    %v662 = vunpack.c.h.b16 %v300
    %v663 = vunpack.c.l.b16 %v301
    %v664 = vunpack.c.h.b16 %v301
    %v665 = vunpack.c.l.b16 %v302
    %v666 = vunpack.c.h.b16 %v302
    %v667 = vunpack.c.l.b16 %v303
    %v668 = vunpack.c.h.b16 %v303
    %v669 = vunpack.c.l.b16 %v304
    %v670 = vunpack.c.h.b16 %v304
    %v671 = vunpack.c.l.b16 %v305
    %v672 = vunpack.c.h.b16 %v305
    %v673 = vunpack.c.l.b16 %v306
    %v674 = vunpack.c.h.b16 %v306
    %v675 = vunpack.c.l.b16 %v307
    %v676 = vunpack.c.h.b16 %v307
    %v677 = vunpack.c.l.b16 %v308
    %v678 = vunpack.c.h.b16 %v308
    %v679 = vunpack.c.l.b16 %v309
    %v680 = vunpack.c.h.b16 %v309
    %v681 = vunpack.c.l.b16 %v310
    %v682 = vunpack.c.h.b16 %v310
    %v683 = vunpack.c.l.b16 %v311
    %v684 = vunpack.c.h.b16 %v311
    %v685 = vunpack.c.l.b16 %v312
    %v686 = vunpack.c.h.b16 %v312
    %v687 = vunpack.c.l.b16 %v313
    %v688 = vunpack.c.h.b16 %v313
    %v689 = vunpack.c.l.b16 %v314
    %v690 = vunpack.c.h.b16 %v314
    %v691 = vunpack.c.l.b16 %v315
    %v692 = vunpack.c.h.b16 %v315
    %v693 = vunpack.c.l.b16 %v316
    %v694 = vunpack.c.h.b16 %v316
    %v695 = vunpack.c.l.b16 %v317
    %v696 = vunpack.c.h.b16 %v317
    %v697 = vunpack.c.l.b16 %v318
    %v698 = vunpack.c.h.b16 %v318
    %v699 = vunpack.c.l.b16 %v319
    %v700 = vunpack.c.h.b16 %v319
    %v701 = vunpack.c.l.b16 %v320
    %v702 = vunpack.c.h.b16 %v320
    %v703 = vunpack.c.l.b16 %v321
    %v704 = vunpack.c.h.b16 %v321
    %v705 = vunpack.c.l.b16 %v322
    %v706 = vunpack.c.h.b16 %v322
    %v707 = vpack.c.b16 %v453, %v451
    %v708 = vpack.c.b16 %v454, %v452
    %v709 = vpack.c.b16 %v457, %v455
    %v710 = vpack.c.b16 %v458, %v456
    %v711 = vpack.c.b16 %v461, %v459
    %v712 = vpack.c.b16 %v462, %v460
    %v713 = vpack.c.b16 %v465, %v463
    %v714 = vpack.c.b16 %v466, %v464
    %v715 = vpack.c.b16 %v469, %v467
    %v716 = vpack.c.b16 %v470, %v468
    %v717 = vpack.c.b16 %v473, %v471
    %v718 = vpack.c.b16 %v474, %v472
    %v719 = vpack.c.b16 %v477, %v475
    %v720 = vpack.c.b16 %v478, %v476
    %v721 = vpack.c.b16 %v481, %v479
    %v722 = vpack.c.b16 %v482, %v480
    %v723 = vpack.c.b16 %v485, %v483
    %v724 = vpack.c.b16 %v486, %v484
    %v725 = vpack.c.b16 %v489, %v487
    %v726 = vpack.c.b16 %v490, %v488
    %v727 = vpack.c.b16 %v493, %v491
    %v728 = vpack.c.b16 %v494, %v492
    %v729 = vpack.c.b16 %v497, %v495
    %v730 = vpack.c.b16 %v498, %v496
    %v731 = vpack.c.b16 %v501, %v499
    %v732 = vpack.c.b16 %v502, %v500
    %v733 = vpack.c.b16 %v505, %v503
    %v734 = vpack.c.b16 %v506, %v504
    %v735 = vpack.c.b16 %v509, %v507
    %v736 = vpack.c.b16 %v510, %v508
    %v737 = vpack.c.b16 %v513, %v511
    %v738 = vpack.c.b16 %v514, %v512
    %v739 = vpack.c.b16 %v517, %v515
    %v740 = vpack.c.b16 %v518, %v516
    %v741 = vpack.c.b16 %v521, %v519
    %v742 = vpack.c.b16 %v522, %v520
    %v743 = vpack.c.b16 %v525, %v523
    %v744 = vpack.c.b16 %v526, %v524
    %v745 = vpack.c.b16 %v529, %v527
    %v746 = vpack.c.b16 %v530, %v528
    %v747 = vpack.c.b16 %v533, %v531
    %v748 = vpack.c.b16 %v534, %v532
    %v749 = vpack.c.b16 %v537, %v535
    %v750 = vpack.c.b16 %v538, %v536
    %v751 = vpack.c.b16 %v541, %v539
    %v752 = vpack.c.b16 %v542, %v540
    %v753 = vpack.c.b16 %v545, %v543
    %v754 = vpack.c.b16 %v546, %v544
    %v755 = vpack.c.b16 %v549, %v547
    %v756 = vpack.c.b16 %v550, %v548
    %v757 = vpack.c.b16 %v553, %v551
    %v758 = vpack.c.b16 %v554, %v552
    %v759 = vpack.c.b16 %v557, %v555
    %v760 = vpack.c.b16 %v558, %v556
    %v761 = vpack.c.b16 %v561, %v559
    %v762 = vpack.c.b16 %v562, %v560
    %v763 = vpack.c.b16 %v565, %v563
    %v764 = vpack.c.b16 %v566, %v564
    %v765 = vpack.c.b16 %v569, %v567
    %v766 = vpack.c.b16 %v570, %v568
    %v767 = vpack.c.b16 %v573, %v571
    %v768 = vpack.c.b16 %v574, %v572
    %v769 = vpack.c.b16 %v577, %v575
    %v770 = vpack.c.b16 %v578, %v576
    %v771 = vpack.c.b16 %v581, %v579
    %v772 = vpack.c.b16 %v582, %v580
    %v773 = vpack.c.b16 %v585, %v583
    %v774 = vpack.c.b16 %v586, %v584
    %v775 = vpack.c.b16 %v589, %v587
    %v776 = vpack.c.b16 %v590, %v588
    %v777 = vpack.c.b16 %v593, %v591
    %v778 = vpack.c.b16 %v594, %v592
    %v779 = vpack.c.b16 %v597, %v595
    %v780 = vpack.c.b16 %v598, %v596
    %v781 = vpack.c.b16 %v601, %v599
    %v782 = vpack.c.b16 %v602, %v600
    %v783 = vpack.c.b16 %v605, %v603
    %v784 = vpack.c.b16 %v606, %v604
    %v785 = vpack.c.b16 %v609, %v607
    %v786 = vpack.c.b16 %v610, %v608
    %v787 = vpack.c.b16 %v613, %v611
    %v788 = vpack.c.b16 %v614, %v612
    %v789 = vpack.c.b16 %v617, %v615
    %v790 = vpack.c.b16 %v618, %v616
    %v791 = vpack.c.b16 %v621, %v619
    %v792 = vpack.c.b16 %v622, %v620
    %v793 = vpack.c.b16 %v625, %v623
    %v794 = vpack.c.b16 %v626, %v624
    %v795 = vpack.c.b16 %v629, %v627
    %v796 = vpack.c.b16 %v630, %v628
    %v797 = vpack.c.b16 %v633, %v631
    %v798 = vpack.c.b16 %v634, %v632
    %v799 = vpack.c.b16 %v637, %v635
    %v800 = vpack.c.b16 %v638, %v636
    %v801 = vpack.c.b16 %v641, %v639
    %v802 = vpack.c.b16 %v642, %v640
    %v803 = vpack.c.b16 %v645, %v643
    %v804 = vpack.c.b16 %v646, %v644
    %v805 = vpack.c.b16 %v649, %v647
    %v806 = vpack.c.b16 %v650, %v648
    %v807 = vpack.c.b16 %v653, %v651
    %v808 = vpack.c.b16 %v654, %v652
    %v809 = vpack.c.b16 %v657, %v655
    %v810 = vpack.c.b16 %v658, %v656
    %v811 = vpack.c.b16 %v661, %v659
    %v812 = vpack.c.b16 %v662, %v660
    %v813 = vpack.c.b16 %v665, %v663
    %v814 = vpack.c.b16 %v666, %v664
    %v815 = vpack.c.b16 %v669, %v667
    %v816 = vpack.c.b16 %v670, %v668
    %v817 = vpack.c.b16 %v673, %v671
    %v818 = vpack.c.b16 %v674, %v672
    %v819 = vpack.c.b16 %v677, %v675
    %v820 = vpack.c.b16 %v678, %v676
    %v821 = vpack.c.b16 %v681, %v679
    %v822 = vpack.c.b16 %v682, %v680
    %v823 = vpack.c.b16 %v685, %v683
    %v824 = vpack.c.b16 %v686, %v684
    %v825 = vpack.c.b16 %v689, %v687
    %v826 = vpack.c.b16 %v690, %v688
    %v827 = vpack.c.b16 %v693, %v691
    %v828 = vpack.c.b16 %v694, %v692
    %v829 = vpack.c.b16 %v697, %v695
    %v830 = vpack.c.b16 %v698, %v696
    %v831 = vpack.c.b16 %v701, %v699
    %v832 = vpack.c.b16 %v702, %v700
    %v833 = vpack.c.b16 %v705, %v703
    %v834 = vpack.c.b16 %v706, %v704
    %963 = vmatprep.subr.bf16.mxu0 %v722
    %964 = vmatpush1.bf16.msra.mxu0 %v721
    %965 = vmatprep.subr.bf16.mxu0 %v720
    %966 = vmatpush1.bf16.msra.mxu0 %v719
    %967 = vmatprep.subr.bf16.mxu0 %v718
    %968 = vmatpush1.bf16.msra.mxu0 %v717
    %969 = vmatprep.subr.bf16.mxu0 %v716
    %970 = vmatpush1.bf16.msra.mxu0 %v715
    %971 = vmatprep.subr.bf16.mxu0 %v714
    %972 = vmatpush1.bf16.msra.mxu0 %v713
    %973 = vmatprep.subr.bf16.mxu0 %v712
    %974 = vmatpush1.bf16.msra.mxu0 %v711
    %975 = vmatprep.subr.bf16.mxu0 %v710
    %976 = vmatpush1.bf16.msra.mxu0 %v709
    %977 = vmatprep.subr.bf16.mxu0 %v708
    %978 = vmatpush1.bf16.msra.mxu0 %v707
    %979 = vmatprep.subr.bf16.mxu0 %v738
    %980 = vmatpush2.bf16.msra.mxu0 %v737
    %981 = vmatprep.subr.bf16.mxu0 %v736
    %982 = vmatpush2.bf16.msra.mxu0 %v735
    %983 = vmatprep.subr.bf16.mxu0 %v734
    %984 = vmatpush2.bf16.msra.mxu0 %v733
    %985 = vmatprep.subr.bf16.mxu0 %v732
    %986 = vmatpush2.bf16.msra.mxu0 %v731
    %987 = vmatprep.subr.bf16.mxu0 %v730
    %988 = vmatpush2.bf16.msra.mxu0 %v729
    %989 = vmatprep.subr.bf16.mxu0 %v728
    %990 = vmatpush2.bf16.msra.mxu0 %v727
    %991 = vmatprep.subr.bf16.mxu0 %v726
    %992 = vmatpush2.bf16.msra.mxu0 %v725
    %993 = vmatprep.subr.bf16.mxu0 %v724
    %994 = vmatpush2.bf16.msra.mxu0 %v723
    %995 = vmatprep.mubr.bf16.mxu0 %v188
    %996 = vmatmul.mubr.bf16.gmra.mxu0 %v187
    %v997 = vpop.f32.mrf.mxu0
    %v998 = vadd.f32 0.0, %v997
    %v999 = vpop.f32.mrf.mxu0
    %v1000 = vadd.f32 0.0, %v999
    %v1001 = vpop.f32.mrf.mxu0
    %v1002 = vpop.f32.mrf.mxu0
    %1003 = vdwg.mxu0
    %1004 = vmatprep.subr.bf16.mxu0 %v754
    %1005 = vmatpush1.bf16.msra.mxu0 %v753
    %1006 = vmatprep.subr.bf16.mxu0 %v752
    %1007 = vmatpush1.bf16.msra.mxu0 %v751
    %1008 = vmatprep.subr.bf16.mxu0 %v750
    %1009 = vmatpush1.bf16.msra.mxu0 %v749
    %1010 = vmatprep.subr.bf16.mxu0 %v748
    %1011 = vmatpush1.bf16.msra.mxu0 %v747
    %1012 = vmatprep.subr.bf16.mxu0 %v746
    %1013 = vmatpush1.bf16.msra.mxu0 %v745
    %1014 = vmatprep.subr.bf16.mxu0 %v744
    %1015 = vmatpush1.bf16.msra.mxu0 %v743
    %1016 = vmatprep.subr.bf16.mxu0 %v742
    %1017 = vmatpush1.bf16.msra.mxu0 %v741
    %1018 = vmatprep.subr.bf16.mxu0 %v740
    %1019 = vmatpush1.bf16.msra.mxu0 %v739
    %1020 = vmatprep.subr.bf16.mxu0 %v770
    %1021 = vmatpush2.bf16.msra.mxu0 %v769
    %1022 = vmatprep.subr.bf16.mxu0 %v768
    %1023 = vmatpush2.bf16.msra.mxu0 %v767
    %1024 = vmatprep.subr.bf16.mxu0 %v766
    %1025 = vmatpush2.bf16.msra.mxu0 %v765
    %1026 = vmatprep.subr.bf16.mxu0 %v764
    %1027 = vmatpush2.bf16.msra.mxu0 %v763
    %1028 = vmatprep.subr.bf16.mxu0 %v762
    %1029 = vmatpush2.bf16.msra.mxu0 %v761
    %1030 = vmatprep.subr.bf16.mxu0 %v760
    %1031 = vmatpush2.bf16.msra.mxu0 %v759
    %1032 = vmatprep.subr.bf16.mxu0 %v758
    %1033 = vmatpush2.bf16.msra.mxu0 %v757
    %1034 = vmatprep.subr.bf16.mxu0 %v756
    %1035 = vmatpush2.bf16.msra.mxu0 %v755
    %1036 = vmatprep.mubr.bf16.mxu0 %v190
    %1037 = vmatmul.mubr.bf16.gmra.mxu0 %v189
    %v1038 = vpop.f32.mrf.mxu0
    %v1039 = vadd.f32 %v998, %v1038
    %v1040 = vpop.f32.mrf.mxu0
    %v1041 = vadd.f32 %v1000, %v1040
    %v1042 = vpop.f32.mrf.mxu0
    %v1043 = vpop.f32.mrf.mxu0
    %1044 = vdwg.mxu0
    %1045 = vmatprep.subr.bf16.mxu0 %v786
    %1046 = vmatpush1.bf16.msra.mxu0 %v785
    %1047 = vmatprep.subr.bf16.mxu0 %v784
    %1048 = vmatpush1.bf16.msra.mxu0 %v783
    %1049 = vmatprep.subr.bf16.mxu0 %v782
    %1050 = vmatpush1.bf16.msra.mxu0 %v781
    %1051 = vmatprep.subr.bf16.mxu0 %v780
    %1052 = vmatpush1.bf16.msra.mxu0 %v779
    %1053 = vmatprep.subr.bf16.mxu0 %v778
    %1054 = vmatpush1.bf16.msra.mxu0 %v777
    %1055 = vmatprep.subr.bf16.mxu0 %v776
    %1056 = vmatpush1.bf16.msra.mxu0 %v775
    %1057 = vmatprep.subr.bf16.mxu0 %v774
    %1058 = vmatpush1.bf16.msra.mxu0 %v773
    %1059 = vmatprep.subr.bf16.mxu0 %v772
    %1060 = vmatpush1.bf16.msra.mxu0 %v771
    %1061 = vmatprep.subr.bf16.mxu0 %v802
    %1062 = vmatpush2.bf16.msra.mxu0 %v801
    %1063 = vmatprep.subr.bf16.mxu0 %v800
    %1064 = vmatpush2.bf16.msra.mxu0 %v799
    %1065 = vmatprep.subr.bf16.mxu0 %v798
    %1066 = vmatpush2.bf16.msra.mxu0 %v797
    %1067 = vmatprep.subr.bf16.mxu0 %v796
    %1068 = vmatpush2.bf16.msra.mxu0 %v795
    %1069 = vmatprep.subr.bf16.mxu0 %v794
    %1070 = vmatpush2.bf16.msra.mxu0 %v793
    %1071 = vmatprep.subr.bf16.mxu0 %v792
    %1072 = vmatpush2.bf16.msra.mxu0 %v791
    %1073 = vmatprep.subr.bf16.mxu0 %v790
    %1074 = vmatpush2.bf16.msra.mxu0 %v789
    %1075 = vmatprep.subr.bf16.mxu0 %v788
    %1076 = vmatpush2.bf16.msra.mxu0 %v787
    %1077 = vmatprep.mubr.bf16.mxu0 %v192
    %1078 = vmatmul.mubr.bf16.gmra.mxu0 %v191
    %v1079 = vpop.f32.mrf.mxu0
    %v1080 = vadd.f32 %v1039, %v1079
    %v1081 = vpop.f32.mrf.mxu0
    %v1082 = vadd.f32 %v1041, %v1081
    %v1083 = vpop.f32.mrf.mxu0
    %v1084 = vpop.f32.mrf.mxu0
    %1085 = vdwg.mxu0
    %1086 = vmatprep.subr.bf16.mxu0 %v818
    %1087 = vmatpush1.bf16.msra.mxu0 %v817
    %1088 = vmatprep.subr.bf16.mxu0 %v816
    %1089 = vmatpush1.bf16.msra.mxu0 %v815
    %1090 = vmatprep.subr.bf16.mxu0 %v814
    %1091 = vmatpush1.bf16.msra.mxu0 %v813
    %1092 = vmatprep.subr.bf16.mxu0 %v812
    %1093 = vmatpush1.bf16.msra.mxu0 %v811
    %1094 = vmatprep.subr.bf16.mxu0 %v810
    %1095 = vmatpush1.bf16.msra.mxu0 %v809
    %1096 = vmatprep.subr.bf16.mxu0 %v808
    %1097 = vmatpush1.bf16.msra.mxu0 %v807
    %1098 = vmatprep.subr.bf16.mxu0 %v806
    %1099 = vmatpush1.bf16.msra.mxu0 %v805
    %1100 = vmatprep.subr.bf16.mxu0 %v804
    %1101 = vmatpush1.bf16.msra.mxu0 %v803
    %1102 = vmatprep.subr.bf16.mxu0 %v834
    %1103 = vmatpush2.bf16.msra.mxu0 %v833
    %1104 = vmatprep.subr.bf16.mxu0 %v832
    %1105 = vmatpush2.bf16.msra.mxu0 %v831
    %1106 = vmatprep.subr.bf16.mxu0 %v830
    %1107 = vmatpush2.bf16.msra.mxu0 %v829
    %1108 = vmatprep.subr.bf16.mxu0 %v828
    %1109 = vmatpush2.bf16.msra.mxu0 %v827
    %1110 = vmatprep.subr.bf16.mxu0 %v826
    %1111 = vmatpush2.bf16.msra.mxu0 %v825
    %1112 = vmatprep.subr.bf16.mxu0 %v824
    %1113 = vmatpush2.bf16.msra.mxu0 %v823
    %1114 = vmatprep.subr.bf16.mxu0 %v822
    %1115 = vmatpush2.bf16.msra.mxu0 %v821
    %1116 = vmatprep.subr.bf16.mxu0 %v820
    %1117 = vmatpush2.bf16.msra.mxu0 %v819
    %1118 = vmatprep.mubr.bf16.mxu0 %v194
    %1119 = vmatmul.mubr.bf16.gmra.mxu0 %v193
    %v1120 = vpop.f32.mrf.mxu0
    %v1121 = vadd.f32 %v1080, %v1120
    %v1122 = vpop.f32.mrf.mxu0
    %v1123 = vadd.f32 %v1082, %v1122
    %v1124 = vpop.f32.mrf.mxu0
    %v1125 = vpop.f32.mrf.mxu0
    %1126 = vdwg.mxu0
    %v1127 = vadd.f32 %v89, %v1121
    %v1128 = vadd.f32 %v90, %v1123
    %1129 = vst [vmem:[#allocation2] sm:$0xff] %v1127
    %1130 = vst [vmem:[#allocation2 + $0x8] sm:$0xff] %v1128
    // Predicated region
    $region50: #{tpu_custom_call.1} parent=1 // pred_check
      %p1131 = pneg %p83
    $region51: #{tpu_custom_call.1} parent=1 // pred_check_branch
      %1133 = sbr.rel (%p1131) target = $region53
    $region52: #{tpu_custom_call.1} parent=1 // pred_region
      %v1134 = vld [vmem:[#allocation2] sm:$0xff]
      %v1135 = vld [vmem:[#allocation2 + $0x8] sm:$0xff]
      %v1136 = vld [vmem:[%s2] sm:$0x3]
      %v1138 = vlaneseq
      %v1139 = vshrl.u32 %v1138, 7
      %v1140 = vsub.s32 0, %v1139
      %v1141 = vrot.slane %v1136, %v1140
      %v1142 = vlaneseq
      %v1143 = vshrl.u32 %v1142, 7
      %v1144 = vsub.s32 1, %v1143
      %v1145 = vrot.slane %v1136, %v1144
      %v1148 = vadd.f32 %v1134, %v1141
      %v1149 = vadd.f32 %v1135, %v1145
      %v1150 = vmax.f32 %v1148, 0.0
      %v1151 = vmax.f32 %v1149, 0.0
      %v1152 = vpack.c.bf16 %v1150, %v1150
      %v1153 = vpack.c.bf16 %v1151, %v1151
      %v1154 = vld [vmem:[#allocation8] sm:$0xf]
      %v1155 = vld [vmem:[#allocation8 + $0x4] sm:$0xf]
      %v1156 = vld [vmem:[#allocation8 + $0x8] sm:$0xf]
      %v1157 = vld [vmem:[#allocation8 + $0xc] sm:$0xf]
      %v1158 = vld [vmem:[#allocation8 + $0x10] sm:$0xf]
      %v1159 = vld [vmem:[#allocation8 + $0x14] sm:$0xf]
      %v1160 = vld [vmem:[#allocation8 + $0x18] sm:$0xf]
      %v1161 = vld [vmem:[#allocation8 + $0x1c] sm:$0xf]
      %v1162 = vld [vmem:[#allocation8 + $0x20] sm:$0xf]
      %v1163 = vld [vmem:[#allocation8 + $0x24] sm:$0xf]
      %v1164 = vld [vmem:[#allocation8 + $0x28] sm:$0xf]
      %v1165 = vld [vmem:[#allocation8 + $0x2c] sm:$0xf]
      %v1166 = vld [vmem:[#allocation8 + $0x30] sm:$0xf]
      %v1167 = vld [vmem:[#allocation8 + $0x34] sm:$0xf]
      %v1168 = vld [vmem:[#allocation8 + $0x38] sm:$0xf]
      %v1169 = vld [vmem:[#allocation8 + $0x3c] sm:$0xf]
      %v1170 = vld [vmem:[#allocation8 + $0x40] sm:$0xf]
      %v1171 = vld [vmem:[#allocation8 + $0x44] sm:$0xf]
      %v1172 = vld [vmem:[#allocation8 + $0x48] sm:$0xf]
      %v1173 = vld [vmem:[#allocation8 + $0x4c] sm:$0xf]
      %v1174 = vld [vmem:[#allocation8 + $0x50] sm:$0xf]
      %v1175 = vld [vmem:[#allocation8 + $0x54] sm:$0xf]
      %v1176 = vld [vmem:[#allocation8 + $0x58] sm:$0xf]
      %v1177 = vld [vmem:[#allocation8 + $0x5c] sm:$0xf]
      %v1178 = vld [vmem:[#allocation8 + $0x60] sm:$0xf]
      %v1179 = vld [vmem:[#allocation8 + $0x64] sm:$0xf]
      %v1180 = vld [vmem:[#allocation8 + $0x68] sm:$0xf]
      %v1181 = vld [vmem:[#allocation8 + $0x6c] sm:$0xf]
      %v1182 = vld [vmem:[#allocation8 + $0x70] sm:$0xf]
      %v1183 = vld [vmem:[#allocation8 + $0x74] sm:$0xf]
      %v1184 = vld [vmem:[#allocation8 + $0x78] sm:$0xf]
      %v1185 = vld [vmem:[#allocation8 + $0x7c] sm:$0xf]
      %v1186 = vld [vmem:[%s4] sm:$0x1]
      %v1188 = vlaneseq
      %v1189 = vshrl.u32 %v1188, 7
      %v1190 = vsub.s32 0, %v1189
      %v1191 = vrot.slane %v1186, %v1190
      %v1225 = vunpack.c.l.b16 %v1154
      %v1226 = vunpack.c.l.b16 %v1155
      %v1227 = vunpack.c.l.b16 %v1156
      %v1228 = vunpack.c.l.b16 %v1157
      %v1229 = vunpack.c.l.b16 %v1158
      %v1230 = vunpack.c.l.b16 %v1159
      %v1231 = vunpack.c.l.b16 %v1160
      %v1232 = vunpack.c.l.b16 %v1161
      %v1233 = vunpack.c.l.b16 %v1162
      %v1234 = vunpack.c.l.b16 %v1163
      %v1235 = vunpack.c.l.b16 %v1164
      %v1236 = vunpack.c.l.b16 %v1165
      %v1237 = vunpack.c.l.b16 %v1166
      %v1238 = vunpack.c.l.b16 %v1167
      %v1239 = vunpack.c.l.b16 %v1168
      %v1240 = vunpack.c.l.b16 %v1169
      %v1241 = vunpack.c.l.b16 %v1170
      %v1242 = vunpack.c.l.b16 %v1171
      %v1243 = vunpack.c.l.b16 %v1172
      %v1244 = vunpack.c.l.b16 %v1173
      %v1245 = vunpack.c.l.b16 %v1174
      %v1246 = vunpack.c.l.b16 %v1175
      %v1247 = vunpack.c.l.b16 %v1176
      %v1248 = vunpack.c.l.b16 %v1177
      %v1249 = vunpack.c.l.b16 %v1178
      %v1250 = vunpack.c.l.b16 %v1179
      %v1251 = vunpack.c.l.b16 %v1180
      %v1252 = vunpack.c.l.b16 %v1181
      %v1253 = vunpack.c.l.b16 %v1182
      %v1254 = vunpack.c.l.b16 %v1183
      %v1255 = vunpack.c.l.b16 %v1184
      %v1256 = vunpack.c.l.b16 %v1185
      %v1257 = vpack.c.b16 %v1226, %v1225
      %v1258 = vpack.c.b16 %v1228, %v1227
      %v1259 = vpack.c.b16 %v1230, %v1229
      %v1260 = vpack.c.b16 %v1232, %v1231
      %v1261 = vpack.c.b16 %v1234, %v1233
      %v1262 = vpack.c.b16 %v1236, %v1235
      %v1263 = vpack.c.b16 %v1238, %v1237
      %v1264 = vpack.c.b16 %v1240, %v1239
      %v1265 = vpack.c.b16 %v1242, %v1241
      %v1266 = vpack.c.b16 %v1244, %v1243
      %v1267 = vpack.c.b16 %v1246, %v1245
      %v1268 = vpack.c.b16 %v1248, %v1247
      %v1269 = vpack.c.b16 %v1250, %v1249
      %v1270 = vpack.c.b16 %v1252, %v1251
      %v1271 = vpack.c.b16 %v1254, %v1253
      %v1272 = vpack.c.b16 %v1256, %v1255
      %1289 = vmatprep.subr.bf16.mxu0 0
      %1290 = vmatpush1.bf16.msra.mxu0 %v1264
      %1291 = vmatprep.subr.bf16.mxu0 0
      %1292 = vmatpush1.bf16.msra.mxu0 %v1263
      %1293 = vmatprep.subr.bf16.mxu0 0
      %1294 = vmatpush1.bf16.msra.mxu0 %v1262
      %1295 = vmatprep.subr.bf16.mxu0 0
      %1296 = vmatpush1.bf16.msra.mxu0 %v1261
      %1297 = vmatprep.subr.bf16.mxu0 0
      %1298 = vmatpush1.bf16.msra.mxu0 %v1260
      %1299 = vmatprep.subr.bf16.mxu0 0
      %1300 = vmatpush1.bf16.msra.mxu0 %v1259
      %1301 = vmatprep.subr.bf16.mxu0 0
      %1302 = vmatpush1.bf16.msra.mxu0 %v1258
      %1303 = vmatprep.subr.bf16.mxu0 0
      %1304 = vmatpush1.bf16.msra.mxu0 %v1257
      %1305 = vmatprep.subr.bf16.mxu0 0
      %1306 = vmatpush2.bf16.msra.mxu0 %v1272
      %1307 = vmatprep.subr.bf16.mxu0 0
      %1308 = vmatpush2.bf16.msra.mxu0 %v1271
      %1309 = vmatprep.subr.bf16.mxu0 0
      %1310 = vmatpush2.bf16.msra.mxu0 %v1270
      %1311 = vmatprep.subr.bf16.mxu0 0
      %1312 = vmatpush2.bf16.msra.mxu0 %v1269
      %1313 = vmatprep.subr.bf16.mxu0 0
      %1314 = vmatpush2.bf16.msra.mxu0 %v1268
      %1315 = vmatprep.subr.bf16.mxu0 0
      %1316 = vmatpush2.bf16.msra.mxu0 %v1267
      %1317 = vmatprep.subr.bf16.mxu0 0
      %1318 = vmatpush2.bf16.msra.mxu0 %v1266
      %1319 = vmatprep.subr.bf16.mxu0 0
      %1320 = vmatpush2.bf16.msra.mxu0 %v1265
      %1321 = vmatprep.mubr.bf16.mxu0 %v1153
      %1322 = vmatmul.mubr.bf16.gmra.mxu0 %v1152
      %v1323 = vpop.f32.mrf.mxu0
      %v1324 = vadd.f32 %v1191, %v1323
      %v1325 = vpop.f32.mrf.mxu0
      %v1326 = vpop.f32.mrf.mxu0
      %v1327 = vpop.f32.mrf.mxu0
      %1328 = vdwg.mxu0
      %v1329 = vmax.f32 %v1324, 0.0
      %v1330 = vpack.c.bf16 %v1329, %v1329
      %v1331 = vld [vmem:[#allocation9] sm:$0xf]
      %v1332 = vld [vmem:[#allocation9 + $0x4] sm:$0xf]
      %v1333 = vld [vmem:[#allocation9 + $0x8] sm:$0xf]
      %v1334 = vld [vmem:[#allocation9 + $0xc] sm:$0xf]
      %v1335 = vld [vmem:[#allocation9 + $0x10] sm:$0xf]
      %v1336 = vld [vmem:[#allocation9 + $0x14] sm:$0xf]
      %v1337 = vld [vmem:[#allocation9 + $0x18] sm:$0xf]
      %v1338 = vld [vmem:[#allocation9 + $0x1c] sm:$0xf]
      %v1339 = vld [vmem:[#allocation9 + $0x20] sm:$0xf]
      %v1340 = vld [vmem:[#allocation9 + $0x24] sm:$0xf]
      %v1341 = vld [vmem:[#allocation9 + $0x28] sm:$0xf]
      %v1342 = vld [vmem:[#allocation9 + $0x2c] sm:$0xf]
      %v1343 = vld [vmem:[#allocation9 + $0x30] sm:$0xf]
      %v1344 = vld [vmem:[#allocation9 + $0x34] sm:$0xf]
      %v1345 = vld [vmem:[#allocation9 + $0x38] sm:$0xf]
      %v1346 = vld [vmem:[#allocation9 + $0x3c] sm:$0xf]
      %v1347 = vld [vmem:[%s6] sm:$0x1]
      %v1349 = vlaneseq
      %v1350 = vshrl.u32 %v1349, 7
      %v1351 = vsub.s32 0, %v1350
      %v1352 = vrot.slane %v1347, %v1351
      %v1370 = vunpack.c.l.b16 %v1331
      %v1371 = vunpack.c.l.b16 %v1332
      %v1372 = vunpack.c.l.b16 %v1333
      %v1373 = vunpack.c.l.b16 %v1334
      %v1374 = vunpack.c.l.b16 %v1335
      %v1375 = vunpack.c.l.b16 %v1336
      %v1376 = vunpack.c.l.b16 %v1337
      %v1377 = vunpack.c.l.b16 %v1338
      %v1378 = vunpack.c.l.b16 %v1339
      %v1379 = vunpack.c.l.b16 %v1340
      %v1380 = vunpack.c.l.b16 %v1341
      %v1381 = vunpack.c.l.b16 %v1342
      %v1382 = vunpack.c.l.b16 %v1343
      %v1383 = vunpack.c.l.b16 %v1344
      %v1384 = vunpack.c.l.b16 %v1345
      %v1385 = vunpack.c.l.b16 %v1346
      %v1386 = vpack.c.b16 %v1371, %v1370
      %v1387 = vpack.c.b16 %v1373, %v1372
      %v1388 = vpack.c.b16 %v1375, %v1374
      %v1389 = vpack.c.b16 %v1377, %v1376
      %v1390 = vpack.c.b16 %v1379, %v1378
      %v1391 = vpack.c.b16 %v1381, %v1380
      %v1392 = vpack.c.b16 %v1383, %v1382
      %v1393 = vpack.c.b16 %v1385, %v1384
      %1402 = vmatprep.subr.bf16.mxu0 0
      %1403 = vmatpush1.bf16.msra.mxu0 %v1393
      %1404 = vmatprep.subr.bf16.mxu0 0
      %1405 = vmatpush1.bf16.msra.mxu0 %v1392
      %1406 = vmatprep.subr.bf16.mxu0 0
      %1407 = vmatpush1.bf16.msra.mxu0 %v1391
      %1408 = vmatprep.subr.bf16.mxu0 0
      %1409 = vmatpush1.bf16.msra.mxu0 %v1390
      %1410 = vmatprep.subr.bf16.mxu0 0
      %1411 = vmatpush1.bf16.msra.mxu0 %v1389
      %1412 = vmatprep.subr.bf16.mxu0 0
      %1413 = vmatpush1.bf16.msra.mxu0 %v1388
      %1414 = vmatprep.subr.bf16.mxu0 0
      %1415 = vmatpush1.bf16.msra.mxu0 %v1387
      %1416 = vmatprep.subr.bf16.mxu0 0
      %1417 = vmatpush1.bf16.msra.mxu0 %v1386
      %1418 = vmatprep.subr.bf16.mxu0 0
      %1419 = vmatpush2.bf16.msra.mxu0 0
      %1420 = vmatprep.subr.bf16.mxu0 0
      %1421 = vmatpush2.bf16.msra.mxu0 0
      %1422 = vmatprep.subr.bf16.mxu0 0
      %1423 = vmatpush2.bf16.msra.mxu0 0
      %1424 = vmatprep.subr.bf16.mxu0 0
      %1425 = vmatpush2.bf16.msra.mxu0 0
      %1426 = vmatprep.subr.bf16.mxu0 0
      %1427 = vmatpush2.bf16.msra.mxu0 0
      %1428 = vmatprep.subr.bf16.mxu0 0
      %1429 = vmatpush2.bf16.msra.mxu0 0
      %1430 = vmatprep.subr.bf16.mxu0 0
      %1431 = vmatpush2.bf16.msra.mxu0 0
      %1432 = vmatprep.subr.bf16.mxu0 0
      %1433 = vmatpush2.bf16.msra.mxu0 0
      %1434 = vmatprep.mubr.bf16.mxu0 0
      %1435 = vmatmul.mubr.bf16.gmra.mxu0 %v1330
      %v1436 = vpop.f32.mrf.mxu0
      %v1437 = vadd.f32 %v1352, %v1436
      %v1438 = vpop.f32.mrf.mxu0
      %v1439 = vpop.f32.mrf.mxu0
      %v1440 = vpop.f32.mrf.mxu0
      %1441 = vdwg.mxu0
      %1442 = vst [vmem:[#allocation11] sm:$0xff] %v1437
    $region53: #{tpu_custom_call.1} parent=1 // pred_fallthru
      _
    // Predicated region
    $region54: #{tpu_custom_call.1} parent=1 // pred_check
      _
    $region55: #{tpu_custom_call.1} parent=1 // pred_check_branch
      %1444 = sbr.rel (0) target = $region57
    $region56: #{tpu_custom_call.1} parent=1 // pred_region
      %s1446 = ssub.s32 128, 128
      %1447 = vsyncadd [#allocation5], %s1446
      %s1449 = sshll.u32 [#allocation11], 4
      %s1450 = int_to_ptr.vmem [resolvable:$true] %s1449
      %1452 = dma.vmem_to_hbm [thread:$0]  %s1450, 128, %s7, [#allocation5]
    $region57: #{tpu_custom_call.1} parent=1 // pred_fallthru
      _
    // Predicated region
    $region58: #{tpu_custom_call.1} parent=1 // pred_check
      _
    $region59: #{tpu_custom_call.1} parent=1 // pred_check_branch
      %1454 = sbr.rel (0) target = $region61
    $region60: #{tpu_custom_call.1} parent=1 // pred_region
      %1455 = dma.done [#allocation5], 128
    $region61: #{tpu_custom_call.1} parent=1 // pred_fallthru
      _
    %1456 = vsyncpa [#allocation4], 1
    %1457 = vsyncpa [#allocation7], 1
    %1458 = vsyncpa [#allocation10], 1
    %1459 = vsyncpa [#allocation5], 1

</llo_original>
